<compile_context>
chip_gen: v7x
topology: tpu7x:2x2x1
jax: 0.10.0
libtpu: 0.0.40
codegen_flags: <defaults>
</compile_context>

<pallas_src>
import functools
import math

import jax
import jax.numpy as jnp
import numpy as np
from jax.experimental import pallas as pl
from jax.experimental.pallas import tpu as pltpu


def mha_kernel(q_in, k_in, v_in,
               wq, bq, wk, bk, wv, bv, wo, bo,
               cos_q, sin_q, cos_k, sin_k,
               out_ref, probs_ref,
               *, num_heads, head_dim):
    H, D = num_heads, head_dim
    half = D // 2

    xq = q_in[0]          # (TQ, E)  -- this batch element's query tile
    xk = k_in[0]          # (S,  E)  -- full key sequence for this batch
    xv = v_in[0]          # (S,  E)

    # ---- fused, lane-dense projections: one (rows,E)@(E,E) GEMM each ----
    # wq/bq are pre-scaled by 1/sqrt(D) and q/k columns are de-interleaved
    # per head on the host.
    qp = jnp.dot(xq, wq[...], preferred_element_type=jnp.float32) + bq[...]
    kp = jnp.dot(xk, wk[...], preferred_element_type=jnp.float32) + bk[...]
    vp = jnp.dot(xv, wv[...], preferred_element_type=jnp.float32) + bv[...]

    # ---- split heads: cheap lane-slice copies (no H-fold activation bcast) --
    def split_heads(x2d):                              # (rows, E) -> (H, rows, D)
        return jnp.stack([x2d[:, h * D:(h + 1) * D] for h in range(H)], axis=0)

    q = split_heads(qp)    # (H, TQ, D)
    k = split_heads(kp)    # (H, S,  D)
    v = split_heads(vp)    # (H, S,  D)

    # ---- rotary embedding ----
    # Columns are de-interleaved ([even|odd]) so the interleaved pair rotation
    # is a plain rotate-half; the +/- signs are folded into the sin table.
    def rope(x, cos, sin):
        rot = jnp.concatenate([x[..., half:], x[..., :half]], axis=-1)
        return x * cos + rot * sin

    q = rope(q, cos_q[...], sin_q[...])      # cos_q/sin_q: (TQ, D), bcast over H
    k = rope(k, cos_k[...], sin_k[...])      # cos_k/sin_k: (S,  D)

    # ---- attention core (per-head batched matmuls; scale already folded) ----
    scores = jnp.einsum('hqd,hkd->hqk', q, k,
                        preferred_element_type=jnp.float32)      # (H, TQ, S)
    m = jnp.max(scores, axis=-1, keepdims=True)
    p = jnp.exp(scores - m)
    denom = jnp.sum(p, axis=-1, keepdims=True)
    probs = p * pl.reciprocal(denom, approx=False)   # exact: keep 1e-4 parity

    probs_ref[0] = probs                             # (H, TQ, S)

    ctx = jnp.einsum('hqk,hkd->hqd', probs, v,
                     preferred_element_type=jnp.float32)          # (H, TQ, D)

    # ---- fused output projection: concat heads on lanes, one K=E GEMM ----
    ctx_flat = jnp.concatenate([ctx[h] for h in range(H)], axis=-1)  # (TQ, E)
    out_ref[0] = jnp.dot(ctx_flat, wo[...],
                         preferred_element_type=jnp.float32) + bo[...]


def multi_head_attention(query, key, value, params, num_heads):
    B, S, E = query.shape
    H = num_heads
    D = E // H
    scale = 1.0 / math.sqrt(D)

    # query-tile size: largest divisor of S among {128,64,32,16,8}, else S
    TQ = S
    for cand in (128, 64, 32, 16, 8):
        if S % cand == 0:
            TQ = cand
            break
    n_q = S // TQ

    # ---- rotary tables, (S, D) only (broadcast over heads in-kernel) ----
    # Reproduces the module verbatim, including cos()/sin() being applied to
    # pos_enc[:, 0::2] == sin(pos * div_term).
    position = np.arange(S, dtype=np.float32)[:, None]                 # (S, 1)
    div_term = np.exp(np.arange(0, D, 2, dtype=np.float32)
                      * (-(math.log(10000.0) / D)))                    # (D/2,)
    theta = np.sin(position * div_term)                                # (S, D/2)
    cos_h = np.cos(theta).astype(np.float32)
    sin_h = np.sin(theta).astype(np.float32)
    # de-interleaved per-head layout: [even dims | odd dims]; sign folded.
    cos_t = jnp.asarray(np.concatenate([cos_h, cos_h], axis=1))        # (S, D)
    sin_t = jnp.asarray(np.concatenate([-sin_h, sin_h], axis=1))       # (S, D)

    # ---- host-side weight layout glue (free) ----
    # Column permutation that de-interleaves each head's dims (applied to the
    # OUTPUT features of q/k; scores are invariant because q and k share it).
    base = np.concatenate([np.arange(0, D, 2), np.arange(1, D, 2)])
    perm = (np.arange(H)[:, None] * D + base[None, :]).reshape(-1)

    wq_m = (jnp.asarray(params["wq"], jnp.float32)[perm, :]).T * scale  # (E, E)
    bq_v = (jnp.asarray(params["bq"], jnp.float32)[perm] * scale).reshape(1, E)
    wk_m = (jnp.asarray(params["wk"], jnp.float32)[perm, :]).T          # (E, E)
    bk_v = jnp.asarray(params["bk"], jnp.float32)[perm].reshape(1, E)
    wv_m = jnp.asarray(params["wv"], jnp.float32).T                     # (E, E)
    bv_v = jnp.asarray(params["bv"], jnp.float32).reshape(1, E)
    wo_m = jnp.asarray(params["wo"], jnp.float32).T                     # (E, E)
    bo_v = jnp.asarray(params["bo"], jnp.float32).reshape(1, E)

    kernel = functools.partial(mha_kernel, num_heads=H, head_dim=D)

    q_spec = pl.BlockSpec((1, TQ, E), lambda b, qi: (b, qi, 0))
    kv_spec = pl.BlockSpec((1, S, E), lambda b, qi: (b, 0, 0))
    w_spec = pl.BlockSpec((E, E), lambda b, qi: (0, 0))
    b_spec = pl.BlockSpec((1, E), lambda b, qi: (0, 0))
    rope_q_spec = pl.BlockSpec((TQ, D), lambda b, qi: (qi, 0))
    rope_k_spec = pl.BlockSpec((S, D), lambda b, qi: (0, 0))

    out, probs = pl.pallas_call(
        kernel,
        out_shape=(
            jax.ShapeDtypeStruct((B, S, E), jnp.float32),
            jax.ShapeDtypeStruct((B, H, S, S), jnp.float32),
        ),
        grid_spec=pltpu.PrefetchScalarGridSpec(
            num_scalar_prefetch=0,
            grid=(B, n_q),
            in_specs=[
                q_spec, kv_spec, kv_spec,             # query tile, key, value
                w_spec, b_spec,                       # Wq, bq (de-interleaved, pre-scaled)
                w_spec, b_spec,                       # Wk, bk (de-interleaved)
                w_spec, b_spec,                       # Wv, bv
                w_spec, b_spec,                       # Wo, bo
                rope_q_spec, rope_q_spec,             # cos/sin for the q tile
                rope_k_spec, rope_k_spec,             # cos/sin for the full k seq
            ],
            out_specs=[
                pl.BlockSpec((1, TQ, E), lambda b, qi: (b, qi, 0)),
                pl.BlockSpec((1, H, TQ, S), lambda b, qi: (b, 0, qi, 0)),
            ],
        ),
        compiler_params=pltpu.CompilerParams(
            dimension_semantics=("parallel", "parallel"),
            vmem_limit_bytes=32 * 1024 * 1024),
    )(query, key, value,
      wq_m, bq_v, wk_m, bk_v, wv_m, bv_v, wo_m, bo_v,
      cos_t, sin_t, cos_t, sin_t)
    return out, probs


def mha_reference(query, key, value, params, num_heads):
    """Pure-JAX transliteration of the PyTorch forward (eval mode)."""
    B, S, E = query.shape
    D = E // num_heads

    def linear(x, w, b):
        return x @ w.T + b

    def split_heads(x):
        return x.reshape(B, S, num_heads, D).transpose(0, 2, 1, 3)  # (B,H,S,D)

    q = split_heads(linear(query, params["wq"], params["bq"]))
    k = split_heads(linear(key, params["wk"], params["bk"]))
    v = split_heads(linear(value, params["wv"], params["bv"]))

    position = jnp.arange(S, dtype=jnp.float32)[:, None]
    div_term = jnp.exp(jnp.arange(0, D, 2, dtype=jnp.float32)
                       * (-(math.log(10000.0) / D)))
    pe_even = jnp.sin(position * div_term)  # == pos_enc[:, 0::2]

    def rope(x):
        xe = x[..., 0::2]
        xo = x[..., 1::2]
        re = xe * jnp.cos(pe_even) - xo * jnp.sin(pe_even)
        ro = xo * jnp.cos(pe_even) + xe * jnp.sin(pe_even)
        out = jnp.zeros_like(x)
        out = out.at[..., 0::2].set(re)
        out = out.at[..., 1::2].set(ro)
        return out

    q = rope(q)
    k = rope(k)
    scores = jnp.einsum("bhqd,bhkd->bhqk", q, k) / math.sqrt(D)
    probs = jax.nn.softmax(scores, axis=-1)
    ctx = jnp.einsum("bhqk,bhkd->bhqd", probs, v)
    ctx = ctx.transpose(0, 2, 1, 3).reshape(B, S, E)
    out = linear(ctx, params["wo"], params["bo"])
    return out, probs


if __name__ == "__main__":
    B, S, E, H = 2, 8, 32, 4

    key0 = jax.random.PRNGKey(0)
    kq, kk, kv = jax.random.split(key0, 3)
    query = jax.random.normal(kq, (B, S, E), dtype=jnp.float32)
    key_in = jax.random.normal(kk, (B, S, E), dtype=jnp.float32)
    value = jax.random.normal(kv, (B, S, E), dtype=jnp.float32)

    # deterministic synthetic parameters (shapes from nn.Linear(E, E))
    pkeys = jax.random.split(jax.random.PRNGKey(42), 8)
    params = {
        "wq": 0.1 * jax.random.normal(pkeys[0], (E, E), dtype=jnp.float32),
        "bq": 0.1 * jax.random.normal(pkeys[1], (E,), dtype=jnp.float32),
        "wk": 0.1 * jax.random.normal(pkeys[2], (E, E), dtype=jnp.float32),
        "bk": 0.1 * jax.random.normal(pkeys[3], (E,), dtype=jnp.float32),
        "wv": 0.1 * jax.random.normal(pkeys[4], (E, E), dtype=jnp.float32),
        "bv": 0.1 * jax.random.normal(pkeys[5], (E,), dtype=jnp.float32),
        "wo": 0.1 * jax.random.normal(pkeys[6], (E, E), dtype=jnp.float32),
        "bo": 0.1 * jax.random.normal(pkeys[7], (E,), dtype=jnp.float32),
    }

    out, probs = multi_head_attention(query, key_in, value, params, H)
    out = jax.block_until_ready(out)
    probs = jax.block_until_ready(probs)

    ref_out, ref_probs = mha_reference(query, key_in, value, params, H)
    np.testing.assert_allclose(np.asarray(out), np.asarray(ref_out),
                               rtol=1e-4, atol=1e-4)
    np.testing.assert_allclose(np.asarray(probs), np.asarray(ref_probs),
                               rtol=1e-4, atol=1e-4)

    print("KERNEL_OK")
</pallas_src>

<mosaic_0001>
module attributes {stable_mosaic.version = 11 : i64} {
  func.func @mha_kernel(%arg0: i32, %arg1: i32, %arg2: memref<1x8x32xf32, #tpu.memory_space<vmem>>, %arg3: memref<1x8x32xf32, #tpu.memory_space<vmem>>, %arg4: memref<1x8x32xf32, #tpu.memory_space<vmem>>, %arg5: memref<32x32xf32, #tpu.memory_space<vmem>>, %arg6: memref<1x32xf32, #tpu.memory_space<vmem>>, %arg7: memref<32x32xf32, #tpu.memory_space<vmem>>, %arg8: memref<1x32xf32, #tpu.memory_space<vmem>>, %arg9: memref<32x32xf32, #tpu.memory_space<vmem>>, %arg10: memref<1x32xf32, #tpu.memory_space<vmem>>, %arg11: memref<32x32xf32, #tpu.memory_space<vmem>>, %arg12: memref<1x32xf32, #tpu.memory_space<vmem>>, %arg13: memref<8x8xf32, #tpu.memory_space<vmem>>, %arg14: memref<8x8xf32, #tpu.memory_space<vmem>>, %arg15: memref<8x8xf32, #tpu.memory_space<vmem>>, %arg16: memref<8x8xf32, #tpu.memory_space<vmem>>, %arg17: memref<1x8x32xf32, #tpu.memory_space<vmem>>, %arg18: memref<1x4x8x8xf32, #tpu.memory_space<vmem>>) attributes {dimension_semantics = [#tpu.dimension_semantics<parallel>, #tpu.dimension_semantics<parallel>], iteration_bounds = array<i64: 2, 1>, scalar_prefetch = 0 : i64, scratch_operands = 0 : i64, tpu.core_type = #tpu.core_type<tc>, window_params = [{transform_indices = @transform_0, window_bounds = array<i64: 1, 8, 32>}, {transform_indices = @transform_1, window_bounds = array<i64: 1, 8, 32>}, {transform_indices = @transform_2, window_bounds = array<i64: 1, 8, 32>}, {pipeline_mode = #tpu.pipeline_mode<synchronous>, transform_indices = @transform_3, window_bounds = array<i64: 32, 32>}, {pipeline_mode = #tpu.pipeline_mode<synchronous>, transform_indices = @transform_4, window_bounds = array<i64: 1, 32>}, {pipeline_mode = #tpu.pipeline_mode<synchronous>, transform_indices = @transform_5, window_bounds = array<i64: 32, 32>}, {pipeline_mode = #tpu.pipeline_mode<synchronous>, transform_indices = @transform_6, window_bounds = array<i64: 1, 32>}, {pipeline_mode = #tpu.pipeline_mode<synchronous>, transform_indices = @transform_7, window_bounds = array<i64: 32, 32>}, {pipeline_mode = #tpu.pipeline_mode<synchronous>, transform_indices = @transform_8, window_bounds = array<i64: 1, 32>}, {pipeline_mode = #tpu.pipeline_mode<synchronous>, transform_indices = @transform_9, window_bounds = array<i64: 32, 32>}, {pipeline_mode = #tpu.pipeline_mode<synchronous>, transform_indices = @transform_10, window_bounds = array<i64: 1, 32>}, {transform_indices = @transform_11, window_bounds = array<i64: 8, 8>}, {transform_indices = @transform_12, window_bounds = array<i64: 8, 8>}, {pipeline_mode = #tpu.pipeline_mode<synchronous>, transform_indices = @transform_13, window_bounds = array<i64: 8, 8>}, {pipeline_mode = #tpu.pipeline_mode<synchronous>, transform_indices = @transform_14, window_bounds = array<i64: 8, 8>}, {transform_indices = @transform_15, window_bounds = array<i64: 1, 8, 32>}, {transform_indices = @transform_16, window_bounds = array<i64: 1, 4, 8, 8>}]} {
    %c0 = arith.constant 0 : index
    %c0_0 = arith.constant 0 : index
    %c0_1 = arith.constant 0 : index
    %0 = vector.load %arg2[%c0, %c0_0, %c0_1] : memref<1x8x32xf32, #tpu.memory_space<vmem>>, vector<1x8x32xf32>
    %1 = vector.shape_cast %0 : vector<1x8x32xf32> to vector<8x32xf32>
    %c0_2 = arith.constant 0 : index
    %c0_3 = arith.constant 0 : index
    %c0_4 = arith.constant 0 : index
    %2 = vector.load %arg3[%c0_2, %c0_3, %c0_4] : memref<1x8x32xf32, #tpu.memory_space<vmem>>, vector<1x8x32xf32>
    %3 = vector.shape_cast %2 : vector<1x8x32xf32> to vector<8x32xf32>
    %c0_5 = arith.constant 0 : index
    %c0_6 = arith.constant 0 : index
    %c0_7 = arith.constant 0 : index
    %4 = vector.load %arg4[%c0_5, %c0_6, %c0_7] : memref<1x8x32xf32, #tpu.memory_space<vmem>>, vector<1x8x32xf32>
    %5 = vector.shape_cast %4 : vector<1x8x32xf32> to vector<8x32xf32>
    %c0_8 = arith.constant 0 : index
    %c0_9 = arith.constant 0 : index
    %6 = vector.load %arg5[%c0_8, %c0_9] : memref<32x32xf32, #tpu.memory_space<vmem>>, vector<32x32xf32>
    %cst = arith.constant dense<0.000000e+00> : vector<8x32xf32>
    %7 = tpu.matmul %1, %6, %cst {dimension_numbers = #tpu.dot_dimension_numbers<[1], [0], [0], [1], [0, 0, 1, 1], [], []>} : vector<8x32xf32>, vector<32x32xf32>, vector<8x32xf32> -> vector<8x32xf32>
    %c0_10 = arith.constant 0 : index
    %c0_11 = arith.constant 0 : index
    %8 = vector.load %arg6[%c0_10, %c0_11] : memref<1x32xf32, #tpu.memory_space<vmem>>, vector<1x32xf32>
    %9 = vector.broadcast %8 : vector<1x32xf32> to vector<8x32xf32>
    %10 = arith.addf %7, %9 : vector<8x32xf32>
    %c0_12 = arith.constant 0 : index
    %c0_13 = arith.constant 0 : index
    %11 = vector.load %arg7[%c0_12, %c0_13] : memref<32x32xf32, #tpu.memory_space<vmem>>, vector<32x32xf32>
    %cst_14 = arith.constant dense<0.000000e+00> : vector<8x32xf32>
    %12 = tpu.matmul %3, %11, %cst_14 {dimension_numbers = #tpu.dot_dimension_numbers<[1], [0], [0], [1], [0, 0, 1, 1], [], []>} : vector<8x32xf32>, vector<32x32xf32>, vector<8x32xf32> -> vector<8x32xf32>
    %c0_15 = arith.constant 0 : index
    %c0_16 = arith.constant 0 : index
    %13 = vector.load %arg8[%c0_15, %c0_16] : memref<1x32xf32, #tpu.memory_space<vmem>>, vector<1x32xf32>
    %14 = vector.broadcast %13 : vector<1x32xf32> to vector<8x32xf32>
    %15 = arith.addf %12, %14 : vector<8x32xf32>
    %c0_17 = arith.constant 0 : index
    %c0_18 = arith.constant 0 : index
    %16 = vector.load %arg9[%c0_17, %c0_18] : memref<32x32xf32, #tpu.memory_space<vmem>>, vector<32x32xf32>
    %cst_19 = arith.constant dense<0.000000e+00> : vector<8x32xf32>
    %17 = tpu.matmul %5, %16, %cst_19 {dimension_numbers = #tpu.dot_dimension_numbers<[1], [0], [0], [1], [0, 0, 1, 1], [], []>} : vector<8x32xf32>, vector<32x32xf32>, vector<8x32xf32> -> vector<8x32xf32>
    %c0_20 = arith.constant 0 : index
    %c0_21 = arith.constant 0 : index
    %18 = vector.load %arg10[%c0_20, %c0_21] : memref<1x32xf32, #tpu.memory_space<vmem>>, vector<1x32xf32>
    %19 = vector.broadcast %18 : vector<1x32xf32> to vector<8x32xf32>
    %20 = arith.addf %17, %19 : vector<8x32xf32>
    %21 = vector.extract_strided_slice %10 {offsets = [0, 0], sizes = [8, 8], strides = [1, 1]} : vector<8x32xf32> to vector<8x8xf32>
    %22 = vector.extract_strided_slice %10 {offsets = [0, 8], sizes = [8, 8], strides = [1, 1]} : vector<8x32xf32> to vector<8x8xf32>
    %23 = vector.extract_strided_slice %10 {offsets = [0, 16], sizes = [8, 8], strides = [1, 1]} : vector<8x32xf32> to vector<8x8xf32>
    %24 = vector.extract_strided_slice %10 {offsets = [0, 24], sizes = [8, 8], strides = [1, 1]} : vector<8x32xf32> to vector<8x8xf32>
    %25 = vector.shape_cast %21 : vector<8x8xf32> to vector<1x8x8xf32>
    %26 = vector.shape_cast %22 : vector<8x8xf32> to vector<1x8x8xf32>
    %27 = vector.shape_cast %23 : vector<8x8xf32> to vector<1x8x8xf32>
    %28 = vector.shape_cast %24 : vector<8x8xf32> to vector<1x8x8xf32>
    %29 = tpu.concatenate %25, %26, %27, %28 in 0 : vector<1x8x8xf32>, vector<1x8x8xf32>, vector<1x8x8xf32>, vector<1x8x8xf32> -> vector<4x8x8xf32>
    %30 = vector.extract_strided_slice %15 {offsets = [0, 0], sizes = [8, 8], strides = [1, 1]} : vector<8x32xf32> to vector<8x8xf32>
    %31 = vector.extract_strided_slice %15 {offsets = [0, 8], sizes = [8, 8], strides = [1, 1]} : vector<8x32xf32> to vector<8x8xf32>
    %32 = vector.extract_strided_slice %15 {offsets = [0, 16], sizes = [8, 8], strides = [1, 1]} : vector<8x32xf32> to vector<8x8xf32>
    %33 = vector.extract_strided_slice %15 {offsets = [0, 24], sizes = [8, 8], strides = [1, 1]} : vector<8x32xf32> to vector<8x8xf32>
    %34 = vector.shape_cast %30 : vector<8x8xf32> to vector<1x8x8xf32>
    %35 = vector.shape_cast %31 : vector<8x8xf32> to vector<1x8x8xf32>
    %36 = vector.shape_cast %32 : vector<8x8xf32> to vector<1x8x8xf32>
    %37 = vector.shape_cast %33 : vector<8x8xf32> to vector<1x8x8xf32>
    %38 = tpu.concatenate %34, %35, %36, %37 in 0 : vector<1x8x8xf32>, vector<1x8x8xf32>, vector<1x8x8xf32>, vector<1x8x8xf32> -> vector<4x8x8xf32>
    %39 = vector.extract_strided_slice %20 {offsets = [0, 0], sizes = [8, 8], strides = [1, 1]} : vector<8x32xf32> to vector<8x8xf32>
    %40 = vector.extract_strided_slice %20 {offsets = [0, 8], sizes = [8, 8], strides = [1, 1]} : vector<8x32xf32> to vector<8x8xf32>
    %41 = vector.extract_strided_slice %20 {offsets = [0, 16], sizes = [8, 8], strides = [1, 1]} : vector<8x32xf32> to vector<8x8xf32>
    %42 = vector.extract_strided_slice %20 {offsets = [0, 24], sizes = [8, 8], strides = [1, 1]} : vector<8x32xf32> to vector<8x8xf32>
    %43 = vector.shape_cast %39 : vector<8x8xf32> to vector<1x8x8xf32>
    %44 = vector.shape_cast %40 : vector<8x8xf32> to vector<1x8x8xf32>
    %45 = vector.shape_cast %41 : vector<8x8xf32> to vector<1x8x8xf32>
    %46 = vector.shape_cast %42 : vector<8x8xf32> to vector<1x8x8xf32>
    %47 = tpu.concatenate %43, %44, %45, %46 in 0 : vector<1x8x8xf32>, vector<1x8x8xf32>, vector<1x8x8xf32>, vector<1x8x8xf32> -> vector<4x8x8xf32>
    %c0_22 = arith.constant 0 : index
    %c0_23 = arith.constant 0 : index
    %48 = vector.load %arg13[%c0_22, %c0_23] : memref<8x8xf32, #tpu.memory_space<vmem>>, vector<8x8xf32>
    %c0_24 = arith.constant 0 : index
    %c0_25 = arith.constant 0 : index
    %49 = vector.load %arg14[%c0_24, %c0_25] : memref<8x8xf32, #tpu.memory_space<vmem>>, vector<8x8xf32>
    %50 = vector.extract_strided_slice %29 {offsets = [0, 0, 4], sizes = [4, 8, 4], strides = [1, 1, 1]} : vector<4x8x8xf32> to vector<4x8x4xf32>
    %51 = vector.extract_strided_slice %29 {offsets = [0, 0, 0], sizes = [4, 8, 4], strides = [1, 1, 1]} : vector<4x8x8xf32> to vector<4x8x4xf32>
    %52 = tpu.concatenate %50, %51 in 2 : vector<4x8x4xf32>, vector<4x8x4xf32> -> vector<4x8x8xf32>
    %53 = vector.shape_cast %48 : vector<8x8xf32> to vector<1x8x8xf32>
    %54 = vector.broadcast %53 : vector<1x8x8xf32> to vector<4x8x8xf32>
    %55 = arith.mulf %29, %54 : vector<4x8x8xf32>
    %56 = vector.shape_cast %49 : vector<8x8xf32> to vector<1x8x8xf32>
    %57 = vector.broadcast %56 : vector<1x8x8xf32> to vector<4x8x8xf32>
    %58 = arith.mulf %52, %57 : vector<4x8x8xf32>
    %59 = arith.addf %55, %58 : vector<4x8x8xf32>
    %c0_26 = arith.constant 0 : index
    %c0_27 = arith.constant 0 : index
    %60 = vector.load %arg15[%c0_26, %c0_27] : memref<8x8xf32, #tpu.memory_space<vmem>>, vector<8x8xf32>
    %c0_28 = arith.constant 0 : index
    %c0_29 = arith.constant 0 : index
    %61 = vector.load %arg16[%c0_28, %c0_29] : memref<8x8xf32, #tpu.memory_space<vmem>>, vector<8x8xf32>
    %62 = vector.extract_strided_slice %38 {offsets = [0, 0, 4], sizes = [4, 8, 4], strides = [1, 1, 1]} : vector<4x8x8xf32> to vector<4x8x4xf32>
    %63 = vector.extract_strided_slice %38 {offsets = [0, 0, 0], sizes = [4, 8, 4], strides = [1, 1, 1]} : vector<4x8x8xf32> to vector<4x8x4xf32>
    %64 = tpu.concatenate %62, %63 in 2 : vector<4x8x4xf32>, vector<4x8x4xf32> -> vector<4x8x8xf32>
    %65 = vector.shape_cast %60 : vector<8x8xf32> to vector<1x8x8xf32>
    %66 = vector.broadcast %65 : vector<1x8x8xf32> to vector<4x8x8xf32>
    %67 = arith.mulf %38, %66 : vector<4x8x8xf32>
    %68 = vector.shape_cast %61 : vector<8x8xf32> to vector<1x8x8xf32>
    %69 = vector.broadcast %68 : vector<1x8x8xf32> to vector<4x8x8xf32>
    %70 = arith.mulf %64, %69 : vector<4x8x8xf32>
    %71 = arith.addf %67, %70 : vector<4x8x8xf32>
    "tpu.trace_start"() <{level = 10 : i32, message = "hqd,hkd->hqk"}> : () -> ()
    %cst_30 = arith.constant dense<0.000000e+00> : vector<4x8x8xf32>
    %72 = tpu.matmul %59, %71, %cst_30 {dimension_numbers = #tpu.dot_dimension_numbers<[2], [2], [1], [1], [0, 0, 0, 1, 1, 1], [0], [0]>} : vector<4x8x8xf32>, vector<4x8x8xf32>, vector<4x8x8xf32> -> vector<4x8x8xf32>
    "tpu.trace_stop"() : () -> ()
    %cst_31 = arith.constant dense<0xFF800000> : vector<4x8xf32>
    %73 = vector.multi_reduction <maximumf>, %72, %cst_31 [2] : vector<4x8x8xf32> to vector<4x8xf32>
    %74 = vector.shape_cast %73 : vector<4x8xf32> to vector<4x8x1xf32>
    %75 = vector.broadcast %74 : vector<4x8x1xf32> to vector<4x8x8xf32>
    %76 = arith.subf %72, %75 : vector<4x8x8xf32>
    %77 = math.exp %76 : vector<4x8x8xf32>
    %cst_32 = arith.constant dense<0.000000e+00> : vector<4x8xf32>
    %78 = vector.multi_reduction <add>, %77, %cst_32 [2] : vector<4x8x8xf32> to vector<4x8xf32>
    %79 = vector.shape_cast %78 : vector<4x8xf32> to vector<4x8x1xf32>
    %80 = tpu.reciprocal %79 : vector<4x8x1xf32> -> vector<4x8x1xf32>
    %81 = vector.broadcast %80 : vector<4x8x1xf32> to vector<4x8x8xf32>
    %82 = arith.mulf %77, %81 : vector<4x8x8xf32>
    %c0_33 = arith.constant 0 : index
    %c0_34 = arith.constant 0 : index
    %c0_35 = arith.constant 0 : index
    %c0_36 = arith.constant 0 : index
    %83 = vector.load %arg18[%c0_33, %c0_34, %c0_35, %c0_36] : memref<1x4x8x8xf32, #tpu.memory_space<vmem>>, vector<1x4x8x8xf32>
    %84 = vector.shape_cast %83 : vector<1x4x8x8xf32> to vector<4x8x8xf32>
    %85 = vector.shape_cast %82 : vector<4x8x8xf32> to vector<1x4x8x8xf32>
    tpu.vector_store %arg18[%c0_33, %c0_34, %c0_35, %c0_36], %85 {strides = array<i32>} : memref<1x4x8x8xf32, #tpu.memory_space<vmem>>, vector<1x4x8x8xf32>,
    "tpu.trace_start"() <{level = 10 : i32, message = "hqk,hkd->hqd"}> : () -> ()
    %cst_37 = arith.constant dense<0.000000e+00> : vector<4x8x8xf32>
    %86 = tpu.matmul %82, %47, %cst_37 {dimension_numbers = #tpu.dot_dimension_numbers<[2], [1], [1], [2], [0, 0, 0, 1, 1, 2], [0], [0]>} : vector<4x8x8xf32>, vector<4x8x8xf32>, vector<4x8x8xf32> -> vector<4x8x8xf32>
    "tpu.trace_stop"() : () -> ()
    %87 = vector.extract_strided_slice %86 {offsets = [0, 0, 0], sizes = [1, 8, 8], strides = [1, 1, 1]} : vector<4x8x8xf32> to vector<1x8x8xf32>
    %88 = vector.shape_cast %87 : vector<1x8x8xf32> to vector<8x8xf32>
    %89 = vector.extract_strided_slice %86 {offsets = [1, 0, 0], sizes = [1, 8, 8], strides = [1, 1, 1]} : vector<4x8x8xf32> to vector<1x8x8xf32>
    %90 = vector.shape_cast %89 : vector<1x8x8xf32> to vector<8x8xf32>
    %91 = vector.extract_strided_slice %86 {offsets = [2, 0, 0], sizes = [1, 8, 8], strides = [1, 1, 1]} : vector<4x8x8xf32> to vector<1x8x8xf32>
    %92 = vector.shape_cast %91 : vector<1x8x8xf32> to vector<8x8xf32>
    %93 = vector.extract_strided_slice %86 {offsets = [3, 0, 0], sizes = [1, 8, 8], strides = [1, 1, 1]} : vector<4x8x8xf32> to vector<1x8x8xf32>
    %94 = vector.shape_cast %93 : vector<1x8x8xf32> to vector<8x8xf32>
    %95 = tpu.concatenate %88, %90, %92, %94 in 1 : vector<8x8xf32>, vector<8x8xf32>, vector<8x8xf32>, vector<8x8xf32> -> vector<8x32xf32>
    %c0_38 = arith.constant 0 : index
    %c0_39 = arith.constant 0 : index
    %96 = vector.load %arg11[%c0_38, %c0_39] : memref<32x32xf32, #tpu.memory_space<vmem>>, vector<32x32xf32>
    %cst_40 = arith.constant dense<0.000000e+00> : vector<8x32xf32>
    %97 = tpu.matmul %95, %96, %cst_40 {dimension_numbers = #tpu.dot_dimension_numbers<[1], [0], [0], [1], [0, 0, 1, 1], [], []>} : vector<8x32xf32>, vector<32x32xf32>, vector<8x32xf32> -> vector<8x32xf32>
    %c0_41 = arith.constant 0 : index
    %c0_42 = arith.constant 0 : index
    %98 = vector.load %arg12[%c0_41, %c0_42] : memref<1x32xf32, #tpu.memory_space<vmem>>, vector<1x32xf32>
    %99 = vector.broadcast %98 : vector<1x32xf32> to vector<8x32xf32>
    %100 = arith.addf %97, %99 : vector<8x32xf32>
    %c0_43 = arith.constant 0 : index
    %c0_44 = arith.constant 0 : index
    %c0_45 = arith.constant 0 : index
    %101 = vector.load %arg17[%c0_43, %c0_44, %c0_45] : memref<1x8x32xf32, #tpu.memory_space<vmem>>, vector<1x8x32xf32>
    %102 = vector.shape_cast %101 : vector<1x8x32xf32> to vector<8x32xf32>
    %103 = vector.shape_cast %100 : vector<8x32xf32> to vector<1x8x32xf32>
    tpu.vector_store %arg17[%c0_43, %c0_44, %c0_45], %103 {strides = array<i32>} : memref<1x8x32xf32, #tpu.memory_space<vmem>>, vector<1x8x32xf32>,
    return
  }
  func.func @transform_0(%arg0: i32, %arg1: i32) -> (i32, i32, i32) {
    %c0_i32 = arith.constant 0 : i32
    %c0_i32_0 = arith.constant 0 : i32
    return %arg0, %arg1, %c0_i32 : i32, i32, i32
  }
  func.func @transform_1(%arg0: i32, %arg1: i32) -> (i32, i32, i32) {
    %c0_i32 = arith.constant 0 : i32
    %c0_i32_0 = arith.constant 0 : i32
    %c0_i32_1 = arith.constant 0 : i32
    return %arg0, %c0_i32, %c0_i32_0 : i32, i32, i32
  }
  func.func @transform_2(%arg0: i32, %arg1: i32) -> (i32, i32, i32) {
    %c0_i32 = arith.constant 0 : i32
    %c0_i32_0 = arith.constant 0 : i32
    %c0_i32_1 = arith.constant 0 : i32
    return %arg0, %c0_i32, %c0_i32_0 : i32, i32, i32
  }
  func.func @transform_3(%arg0: i32, %arg1: i32) -> (i32, i32) {
    %c0_i32 = arith.constant 0 : i32
    %c0_i32_0 = arith.constant 0 : i32
    %c0_i32_1 = arith.constant 0 : i32
    return %c0_i32, %c0_i32_0 : i32, i32
  }
  func.func @transform_4(%arg0: i32, %arg1: i32) -> (i32, i32) {
    %c0_i32 = arith.constant 0 : i32
    %c0_i32_0 = arith.constant 0 : i32
    %c0_i32_1 = arith.constant 0 : i32
    return %c0_i32, %c0_i32_0 : i32, i32
  }
  func.func @transform_5(%arg0: i32, %arg1: i32) -> (i32, i32) {
    %c0_i32 = arith.constant 0 : i32
    %c0_i32_0 = arith.constant 0 : i32
    %c0_i32_1 = arith.constant 0 : i32
    return %c0_i32, %c0_i32_0 : i32, i32
  }
  func.func @transform_6(%arg0: i32, %arg1: i32) -> (i32, i32) {
    %c0_i32 = arith.constant 0 : i32
    %c0_i32_0 = arith.constant 0 : i32
    %c0_i32_1 = arith.constant 0 : i32
    return %c0_i32, %c0_i32_0 : i32, i32
  }
  func.func @transform_7(%arg0: i32, %arg1: i32) -> (i32, i32) {
    %c0_i32 = arith.constant 0 : i32
    %c0_i32_0 = arith.constant 0 : i32
    %c0_i32_1 = arith.constant 0 : i32
    return %c0_i32, %c0_i32_0 : i32, i32
  }
  func.func @transform_8(%arg0: i32, %arg1: i32) -> (i32, i32) {
    %c0_i32 = arith.constant 0 : i32
    %c0_i32_0 = arith.constant 0 : i32
    %c0_i32_1 = arith.constant 0 : i32
    return %c0_i32, %c0_i32_0 : i32, i32
  }
  func.func @transform_9(%arg0: i32, %arg1: i32) -> (i32, i32) {
    %c0_i32 = arith.constant 0 : i32
    %c0_i32_0 = arith.constant 0 : i32
    %c0_i32_1 = arith.constant 0 : i32
    return %c0_i32, %c0_i32_0 : i32, i32
  }
  func.func @transform_10(%arg0: i32, %arg1: i32) -> (i32, i32) {
    %c0_i32 = arith.constant 0 : i32
    %c0_i32_0 = arith.constant 0 : i32
    %c0_i32_1 = arith.constant 0 : i32
    return %c0_i32, %c0_i32_0 : i32, i32
  }
  func.func @transform_11(%arg0: i32, %arg1: i32) -> (i32, i32) {
    %c0_i32 = arith.constant 0 : i32
    %c0_i32_0 = arith.constant 0 : i32
    return %arg1, %c0_i32 : i32, i32
  }
  func.func @transform_12(%arg0: i32, %arg1: i32) -> (i32, i32) {
    %c0_i32 = arith.constant 0 : i32
    %c0_i32_0 = arith.constant 0 : i32
    return %arg1, %c0_i32 : i32, i32
  }
  func.func @transform_13(%arg0: i32, %arg1: i32) -> (i32, i32) {
    %c0_i32 = arith.constant 0 : i32
    %c0_i32_0 = arith.constant 0 : i32
    %c0_i32_1 = arith.constant 0 : i32
    return %c0_i32, %c0_i32_0 : i32, i32
  }
  func.func @transform_14(%arg0: i32, %arg1: i32) -> (i32, i32) {
    %c0_i32 = arith.constant 0 : i32
    %c0_i32_0 = arith.constant 0 : i32
    %c0_i32_1 = arith.constant 0 : i32
    return %c0_i32, %c0_i32_0 : i32, i32
  }
  func.func @transform_15(%arg0: i32, %arg1: i32) -> (i32, i32, i32) {
    %c0_i32 = arith.constant 0 : i32
    %c0_i32_0 = arith.constant 0 : i32
    return %arg0, %arg1, %c0_i32 : i32, i32, i32
  }
  func.func @transform_16(%arg0: i32, %arg1: i32) -> (i32, i32, i32, i32) {
    %c0_i32 = arith.constant 0 : i32
    %c0_i32_0 = arith.constant 0 : i32
    %c0_i32_1 = arith.constant 0 : i32
    return %arg0, %c0_i32, %arg1, %c0_i32_0 : i32, i32, i32, i32
  }
}

</mosaic_0001>

<llo_original>
// kernel: tpu_custom_call.1
$region0: #{tpu_custom_call.1}
  #allocation0 [shape = 'u32[]', space=smem, size = 0x4, offset = 0x4, fixed_abs, tag = 'smem constant byte address 0x4 - core index']
  #allocation1 [shape = 'u32[144,128]{1,0:T(1,128)}', space=vmem, size = 0x12000, scoped, tag = 'internal scratch']
  %s0 = inlined_call_operand.hbm [shape: f32[2,8,32], index: 0, kind: input, shape index: {}]
  %s1 = inlined_call_operand.hbm [shape: f32[2,8,32], index: 1, kind: input, shape index: {}]
  %s2 = inlined_call_operand.hbm [shape: f32[2,8,32], index: 2, kind: input, shape index: {}]
  %s3 = inlined_call_operand.hbm [shape: f32[32,32], index: 3, kind: input, shape index: {}]
  %s4 = inlined_call_operand.vmem [shape: f32[1,32], index: 4, kind: input, shape index: {}]
  %s5 = inlined_call_operand.hbm [shape: f32[32,32], index: 5, kind: input, shape index: {}]
  %s6 = inlined_call_operand.hbm [shape: f32[1,32], index: 6, kind: input, shape index: {}]
  %s7 = inlined_call_operand.hbm [shape: f32[32,32], index: 7, kind: input, shape index: {}]
  %s8 = inlined_call_operand.hbm [shape: f32[1,32], index: 8, kind: input, shape index: {}]
  %s9 = inlined_call_operand.vmem [shape: f32[32,32], index: 9, kind: input, shape index: {}]
  %s10 = inlined_call_operand.hbm [shape: f32[1,32], index: 10, kind: input, shape index: {}]
  %s11 = inlined_call_operand.vmem [shape: f32[8,8], index: 11, kind: input, shape index: {}]
  %s12 = inlined_call_operand.hbm [shape: f32[8,8], index: 12, kind: input, shape index: {}]
  %s13 = inlined_call_operand.vmem [shape: f32[8,8], index: 13, kind: input, shape index: {}]
  %s14 = inlined_call_operand.hbm [shape: f32[8,8], index: 14, kind: input, shape index: {}]
  %s15 = inlined_call_operand.hbm [shape: f32[2,8,32], index: 15, kind: output, shape index: {0}]
  %s16 = inlined_call_operand.hbm [shape: f32[2,4,8,8], index: 16, kind: output, shape index: {1}]
  %17 = xla_tuple %s15, %s16
  %s18 = sld [smem:[#allocation0]]
  $region145: #{tpu_custom_call.1} parent=0
    _
  %s20 = ssub.s32 1, %s18
  %s21 = scalar_select 0, %s20, %s18
  $region1: #{tpu_custom_call.1} parent=0
    #allocation2 [shape = 'u8[8192]{0}', space=vmem, size = 0x2000, scoped, tag = 'input window, operand 0']
    #allocation3 [shape = 's32[2]{0}', space=sflag, size = 0x8, scoped, tag = 'scoped memory for tpu_custom_call.1']
    #allocation4 [shape = 's32[2]{0}', space=sflag, size = 0x8, scoped, tag = 'scoped memory for tpu_custom_call.1']
    #allocation5 [shape = 'u8[8192]{0}', space=vmem, size = 0x2000, scoped, tag = 'input window, operand 1']
    #allocation6 [shape = 's32[2]{0}', space=sflag, size = 0x8, scoped, tag = 'scoped memory for tpu_custom_call.1']
    #allocation7 [shape = 'u8[8192]{0}', space=vmem, size = 0x2000, scoped, tag = 'input window, operand 2']
    #allocation8 [shape = 'u8[16384]{0}', space=vmem, size = 0x4000, scoped, tag = 'input window, operand 3, single buffered']
    #allocation9 [shape = 's32[1]{0}', space=sflag, size = 0x4, scoped, tag = 'scoped memory for tpu_custom_call.1']
    #allocation10 [shape = 'u8[16384]{0}', space=vmem, size = 0x4000, scoped, tag = 'input window, operand 5, single buffered']
    #allocation11 [shape = 'u8[512]{0}', space=vmem, size = 0x400, scoped, tag = 'input window, operand 6, single buffered']
    #allocation12 [shape = 's32[1]{0}', space=sflag, size = 0x4, scoped, tag = 'scoped memory for tpu_custom_call.1']
    #allocation13 [shape = 'u8[16384]{0}', space=vmem, size = 0x4000, scoped, tag = 'input window, operand 7, single buffered']
    #allocation14 [shape = 'u8[512]{0}', space=vmem, size = 0x400, scoped, tag = 'input window, operand 8, single buffered']
    #allocation15 [shape = 's32[1]{0}', space=sflag, size = 0x4, scoped, tag = 'scoped memory for tpu_custom_call.1']
    #allocation16 [shape = 'u8[512]{0}', space=vmem, size = 0x400, scoped, tag = 'input window, operand 10, single buffered']
    #allocation17 [shape = 'u8[4096]{0}', space=vmem, size = 0x1000, scoped, tag = 'input window, operand 12, single buffered']
    #allocation18 [shape = 's32[1]{0}', space=sflag, size = 0x4, scoped, tag = 'scoped memory for tpu_custom_call.1']
    #allocation19 [shape = 'u8[4096]{0}', space=vmem, size = 0x1000, scoped, tag = 'input window, operand 14, single buffered']
    #allocation20 [shape = 'u8[8192]{0}', space=vmem, size = 0x2000, scoped, tag = 'output window, operand 0']
    #allocation21 [shape = 'u8[32768]{0}', space=vmem, size = 0x8000, scoped, tag = 'output window, operand 1']
    #allocation22 [shape = 's32[2]{0}', space=sflag, size = 0x8, scoped, tag = 'scoped memory for tpu_custom_call.1']
    %22 = vsyncpa [#allocation3], 0
    %s23 = scalar_lea.sflag [#allocation3], 1
    %24 = vsyncpa %s23, 0
    %25 = vsyncpa [#allocation6], 0
    %s26 = scalar_lea.sflag [#allocation6], 1
    %27 = vsyncpa %s26, 0
    %28 = vsyncpa [#allocation9], 0
    %29 = vsyncpa [#allocation12], 0
    %30 = vsyncpa [#allocation15], 0
    %31 = vsyncpa [#allocation18], 0
    %32 = vsyncpa [#allocation4], 0
    %s33 = scalar_lea.sflag [#allocation4], 1
    %34 = vsyncpa %s33, 0
    %35 = vsyncpa [#allocation22], 0
    %s36 = scalar_lea.sflag [#allocation22], 1
    %37 = vsyncpa %s36, 0
    loop: start=0, step=1, limit=4
    $region2: #{tpu_custom_call.1} parent=1 // loop_pre_header
      _
    $region3: #{tpu_custom_call.1} parent=1 // loop_header
      %s39 = sphi 0, %s43
      %p40 = scmp.ge.s32.totalorder %s39, 4
      %s46 = sphi 0, %s58
      %s47 = sphi 0, %s54
      %s48 = sphi 0, %s46
      %s49 = sphi 0, %s47
      %s50 = sphi 0, %s48
      %s51 = sphi 0, %s49
      %s63 = sphi 0, %s65
      %s66 = sphi 0, %s63
      %s67 = sphi 0, %s66
      %s83 = sphi 0, %s67
      %s89 = sphi 0, %s91
      %s92 = sphi 0, %s89
      %s93 = sphi 0, %s92
      %s109 = sphi 0, %s93
      %s115 = sphi 0, %s117
      %s118 = sphi 0, %s115
      %s119 = sphi 0, %s118
      %s135 = sphi 0, %s119
      %s139 = sphi 0, %s139
      %s141 = sphi 0, %s139
      %s142 = sphi 0, %s141
      %s156 = sphi 0, %s142
      %s160 = sphi 0, %s160
      %s162 = sphi 0, %s160
      %s163 = sphi 0, %s162
      %s177 = sphi 0, %s163
      %s181 = sphi 0, %s181
      %s183 = sphi 0, %s181
      %s184 = sphi 0, %s183
      %s198 = sphi 0, %s184
      %s202 = sphi 0, %s202
      %s204 = sphi 0, %s202
      %s205 = sphi 0, %s204
      %s219 = sphi 0, %s205
      %s223 = sphi 0, %s223
      %s225 = sphi 0, %s223
      %s226 = sphi 0, %s225
      %s240 = sphi 0, %s226
      %s244 = sphi 0, %s244
      %s246 = sphi 0, %s244
      %s247 = sphi 0, %s246
      %s261 = sphi 0, %s247
      %s265 = sphi 0, %s265
      %s267 = sphi 0, %s265
      %s268 = sphi 0, %s267
      %s282 = sphi 0, %s268
      %s286 = sphi 0, %s286
      %s288 = sphi 0, %s286
      %s289 = sphi 0, %s288
      %s303 = sphi 0, %s289
      %s309 = sphi 0, %s311
      %s312 = sphi 0, %s309
      %s313 = sphi 0, %s312
      %s329 = sphi 0, %s313
      %s335 = sphi 0, %s337
      %s338 = sphi 0, %s335
      %s339 = sphi 0, %s338
      %s355 = sphi 0, %s339
      %s359 = sphi 0, %s359
      %s361 = sphi 0, %s359
      %s362 = sphi 0, %s361
      %s376 = sphi 0, %s362
      %s380 = sphi 0, %s380
      %s382 = sphi 0, %s380
      %s383 = sphi 0, %s382
      %s397 = sphi 0, %s383
      %s405 = sphi 0, %s407
      %s408 = sphi 0, %s405
      %s409 = sphi 0, %s408
      %s425 = sphi 0, %s409
      %s433 = sphi 0, %s435
      %s436 = sphi 0, %s433
      %s437 = sphi 0, %s436
      %s453 = sphi 0, %s437
    $region4: #{tpu_custom_call.1} parent=1 // loop_header_branch
      %42 = sbr.rel (%p40) target = $region8
    $region5: #{tpu_custom_call.1} parent=1 // loop_body
      %s44 = ssub.s32 %s39, 1
      %s45 = ssub.s32 %s39, 2
      %s52 = sadd.s32 1, %s47
      %p53 = scmp.ge.s32.totalorder %s52, 1
      %s54 = scalar_select %p53, 0, %s52
      %s55 = sadd.s32 1, %s46
      %s56 = scalar_select %p53, %s55, %s46
      %p57 = scmp.ge.s32.totalorder %s56, 2
      %s58 = scalar_select %p57, 0, %s56
      %s59 = ssub.s32 %s46, %s58
      %s60 = ssub.s32 %s47, %s54
      %s61 = sor.u32 %s59, %s60
      %p62 = scmp.eq.s32.totalorder %s61, 0
      %s64 = sadd.s32 %s63, 1
      %s65 = scalar_select %p62, %s63, %s64
      %p68 = pneg %p62
      %p69 = scmp.eq.s32.totalorder %s39, 1
      %p70 = por %p68, %p69
      %p71 = scmp.ne.s32.totalorder %s63, %s66
      %p72 = scmp.eq.s32.totalorder %s39, 0
      %p73 = por %p71, %p72
      %p74 = scmp.ne.s32.totalorder %s63, %s66
      %p75 = scmp.eq.s32.totalorder %s44, 1
      %p76 = por %p74, %p75
      %p77 = scmp.ne.s32.totalorder %s66, %s67
      %p78 = scmp.eq.s32.totalorder %s44, 0
      %p79 = por %p77, %p78
      %p80 = scmp.ne.s32.totalorder %s66, %s67
      %p81 = scmp.eq.s32.totalorder %s45, 1
      %p82 = por %p80, %p81
      %p84 = scmp.ne.s32.totalorder %s67, %s83
      %p85 = scmp.eq.s32.totalorder %s45, 0
      %p86 = por %p84, %p85
      %s87 = ssub.s32 %s46, %s58
      %p88 = scmp.eq.s32.totalorder %s87, 0
      %s90 = sadd.s32 %s89, 1
      %s91 = scalar_select %p88, %s89, %s90
      %p94 = pneg %p88
      %p95 = scmp.eq.s32.totalorder %s39, 1
      %p96 = por %p94, %p95
      %p97 = scmp.ne.s32.totalorder %s89, %s92
      %p98 = scmp.eq.s32.totalorder %s39, 0
      %p99 = por %p97, %p98
      %p100 = scmp.ne.s32.totalorder %s89, %s92
      %p101 = scmp.eq.s32.totalorder %s44, 1
      %p102 = por %p100, %p101
      %p103 = scmp.ne.s32.totalorder %s92, %s93
      %p104 = scmp.eq.s32.totalorder %s44, 0
      %p105 = por %p103, %p104
      %p106 = scmp.ne.s32.totalorder %s92, %s93
      %p107 = scmp.eq.s32.totalorder %s45, 1
      %p108 = por %p106, %p107
      %p110 = scmp.ne.s32.totalorder %s93, %s109
      %p111 = scmp.eq.s32.totalorder %s45, 0
      %p112 = por %p110, %p111
      %s113 = ssub.s32 %s46, %s58
      %p114 = scmp.eq.s32.totalorder %s113, 0
      %s116 = sadd.s32 %s115, 1
      %s117 = scalar_select %p114, %s115, %s116
      %p120 = pneg %p114
      %p121 = scmp.eq.s32.totalorder %s39, 1
      %p122 = por %p120, %p121
      %p123 = scmp.ne.s32.totalorder %s115, %s118
      %p124 = scmp.eq.s32.totalorder %s39, 0
      %p125 = por %p123, %p124
      %p126 = scmp.ne.s32.totalorder %s115, %s118
      %p127 = scmp.eq.s32.totalorder %s44, 1
      %p128 = por %p126, %p127
      %p129 = scmp.ne.s32.totalorder %s118, %s119
      %p130 = scmp.eq.s32.totalorder %s44, 0
      %p131 = por %p129, %p130
      %p132 = scmp.ne.s32.totalorder %s118, %s119
      %p133 = scmp.eq.s32.totalorder %s45, 1
      %p134 = por %p132, %p133
      %p136 = scmp.ne.s32.totalorder %s119, %s135
      %p137 = scmp.eq.s32.totalorder %s45, 0
      %p138 = por %p136, %p137
      %s140 = sadd.s32 %s139, 1
      %p143 = scmp.eq.s32.totalorder %s39, 1
      %p144 = scmp.ne.s32.totalorder %s139, %s141
      %p145 = scmp.eq.s32.totalorder %s39, 0
      %p146 = por %p144, %p145
      %p147 = scmp.ne.s32.totalorder %s139, %s141
      %p148 = scmp.eq.s32.totalorder %s44, 1
      %p149 = por %p147, %p148
      %p150 = scmp.ne.s32.totalorder %s141, %s142
      %p151 = scmp.eq.s32.totalorder %s44, 0
      %p152 = por %p150, %p151
      %p153 = scmp.ne.s32.totalorder %s141, %s142
      %p154 = scmp.eq.s32.totalorder %s45, 1
      %p155 = por %p153, %p154
      %p157 = scmp.ne.s32.totalorder %s142, %s156
      %p158 = scmp.eq.s32.totalorder %s45, 0
      %p159 = por %p157, %p158
      %s161 = sadd.s32 %s160, 1
      %p164 = scmp.eq.s32.totalorder %s39, 1
      %p165 = scmp.ne.s32.totalorder %s160, %s162
      %p166 = scmp.eq.s32.totalorder %s39, 0
      %p167 = por %p165, %p166
      %p168 = scmp.ne.s32.totalorder %s160, %s162
      %p169 = scmp.eq.s32.totalorder %s44, 1
      %p170 = por %p168, %p169
      %p171 = scmp.ne.s32.totalorder %s162, %s163
      %p172 = scmp.eq.s32.totalorder %s44, 0
      %p173 = por %p171, %p172
      %p174 = scmp.ne.s32.totalorder %s162, %s163
      %p175 = scmp.eq.s32.totalorder %s45, 1
      %p176 = por %p174, %p175
      %p178 = scmp.ne.s32.totalorder %s163, %s177
      %p179 = scmp.eq.s32.totalorder %s45, 0
      %p180 = por %p178, %p179
      %s182 = sadd.s32 %s181, 1
      %p185 = scmp.eq.s32.totalorder %s39, 1
      %p186 = scmp.ne.s32.totalorder %s181, %s183
      %p187 = scmp.eq.s32.totalorder %s39, 0
      %p188 = por %p186, %p187
      %p189 = scmp.ne.s32.totalorder %s181, %s183
      %p190 = scmp.eq.s32.totalorder %s44, 1
      %p191 = por %p189, %p190
      %p192 = scmp.ne.s32.totalorder %s183, %s184
      %p193 = scmp.eq.s32.totalorder %s44, 0
      %p194 = por %p192, %p193
      %p195 = scmp.ne.s32.totalorder %s183, %s184
      %p196 = scmp.eq.s32.totalorder %s45, 1
      %p197 = por %p195, %p196
      %p199 = scmp.ne.s32.totalorder %s184, %s198
      %p200 = scmp.eq.s32.totalorder %s45, 0
      %p201 = por %p199, %p200
      %s203 = sadd.s32 %s202, 1
      %p206 = scmp.eq.s32.totalorder %s39, 1
      %p207 = scmp.ne.s32.totalorder %s202, %s204
      %p208 = scmp.eq.s32.totalorder %s39, 0
      %p209 = por %p207, %p208
      %p210 = scmp.ne.s32.totalorder %s202, %s204
      %p211 = scmp.eq.s32.totalorder %s44, 1
      %p212 = por %p210, %p211
      %p213 = scmp.ne.s32.totalorder %s204, %s205
      %p214 = scmp.eq.s32.totalorder %s44, 0
      %p215 = por %p213, %p214
      %p216 = scmp.ne.s32.totalorder %s204, %s205
      %p217 = scmp.eq.s32.totalorder %s45, 1
      %p218 = por %p216, %p217
      %p220 = scmp.ne.s32.totalorder %s205, %s219
      %p221 = scmp.eq.s32.totalorder %s45, 0
      %p222 = por %p220, %p221
      %s224 = sadd.s32 %s223, 1
      %p227 = scmp.eq.s32.totalorder %s39, 1
      %p228 = scmp.ne.s32.totalorder %s223, %s225
      %p229 = scmp.eq.s32.totalorder %s39, 0
      %p230 = por %p228, %p229
      %p231 = scmp.ne.s32.totalorder %s223, %s225
      %p232 = scmp.eq.s32.totalorder %s44, 1
      %p233 = por %p231, %p232
      %p234 = scmp.ne.s32.totalorder %s225, %s226
      %p235 = scmp.eq.s32.totalorder %s44, 0
      %p236 = por %p234, %p235
      %p237 = scmp.ne.s32.totalorder %s225, %s226
      %p238 = scmp.eq.s32.totalorder %s45, 1
      %p239 = por %p237, %p238
      %p241 = scmp.ne.s32.totalorder %s226, %s240
      %p242 = scmp.eq.s32.totalorder %s45, 0
      %p243 = por %p241, %p242
      %s245 = sadd.s32 %s244, 1
      %p248 = scmp.eq.s32.totalorder %s39, 1
      %p249 = scmp.ne.s32.totalorder %s244, %s246
      %p250 = scmp.eq.s32.totalorder %s39, 0
      %p251 = por %p249, %p250
      %p252 = scmp.ne.s32.totalorder %s244, %s246
      %p253 = scmp.eq.s32.totalorder %s44, 1
      %p254 = por %p252, %p253
      %p255 = scmp.ne.s32.totalorder %s246, %s247
      %p256 = scmp.eq.s32.totalorder %s44, 0
      %p257 = por %p255, %p256
      %p258 = scmp.ne.s32.totalorder %s246, %s247
      %p259 = scmp.eq.s32.totalorder %s45, 1
      %p260 = por %p258, %p259
      %p262 = scmp.ne.s32.totalorder %s247, %s261
      %p263 = scmp.eq.s32.totalorder %s45, 0
      %p264 = por %p262, %p263
      %s266 = sadd.s32 %s265, 1
      %p269 = scmp.eq.s32.totalorder %s39, 1
      %p270 = scmp.ne.s32.totalorder %s265, %s267
      %p271 = scmp.eq.s32.totalorder %s39, 0
      %p272 = por %p270, %p271
      %p273 = scmp.ne.s32.totalorder %s265, %s267
      %p274 = scmp.eq.s32.totalorder %s44, 1
      %p275 = por %p273, %p274
      %p276 = scmp.ne.s32.totalorder %s267, %s268
      %p277 = scmp.eq.s32.totalorder %s44, 0
      %p278 = por %p276, %p277
      %p279 = scmp.ne.s32.totalorder %s267, %s268
      %p280 = scmp.eq.s32.totalorder %s45, 1
      %p281 = por %p279, %p280
      %p283 = scmp.ne.s32.totalorder %s268, %s282
      %p284 = scmp.eq.s32.totalorder %s45, 0
      %p285 = por %p283, %p284
      %s287 = sadd.s32 %s286, 1
      %p290 = scmp.eq.s32.totalorder %s39, 1
      %p291 = scmp.ne.s32.totalorder %s286, %s288
      %p292 = scmp.eq.s32.totalorder %s39, 0
      %p293 = por %p291, %p292
      %p294 = scmp.ne.s32.totalorder %s286, %s288
      %p295 = scmp.eq.s32.totalorder %s44, 1
      %p296 = por %p294, %p295
      %p297 = scmp.ne.s32.totalorder %s288, %s289
      %p298 = scmp.eq.s32.totalorder %s44, 0
      %p299 = por %p297, %p298
      %p300 = scmp.ne.s32.totalorder %s288, %s289
      %p301 = scmp.eq.s32.totalorder %s45, 1
      %p302 = por %p300, %p301
      %p304 = scmp.ne.s32.totalorder %s289, %s303
      %p305 = scmp.eq.s32.totalorder %s45, 0
      %p306 = por %p304, %p305
      %s307 = ssub.s32 %s47, %s54
      %p308 = scmp.eq.s32.totalorder %s307, 0
      %s310 = sadd.s32 %s309, 1
      %s311 = scalar_select %p308, %s309, %s310
      %p314 = pneg %p308
      %p315 = scmp.eq.s32.totalorder %s39, 1
      %p316 = por %p314, %p315
      %p317 = scmp.ne.s32.totalorder %s309, %s312
      %p318 = scmp.eq.s32.totalorder %s39, 0
      %p319 = por %p317, %p318
      %p320 = scmp.ne.s32.totalorder %s309, %s312
      %p321 = scmp.eq.s32.totalorder %s44, 1
      %p322 = por %p320, %p321
      %p323 = scmp.ne.s32.totalorder %s312, %s313
      %p324 = scmp.eq.s32.totalorder %s44, 0
      %p325 = por %p323, %p324
      %p326 = scmp.ne.s32.totalorder %s312, %s313
      %p327 = scmp.eq.s32.totalorder %s45, 1
      %p328 = por %p326, %p327
      %p330 = scmp.ne.s32.totalorder %s313, %s329
      %p331 = scmp.eq.s32.totalorder %s45, 0
      %p332 = por %p330, %p331
      %s333 = ssub.s32 %s47, %s54
      %p334 = scmp.eq.s32.totalorder %s333, 0
      %s336 = sadd.s32 %s335, 1
      %s337 = scalar_select %p334, %s335, %s336
      %p340 = pneg %p334
      %p341 = scmp.eq.s32.totalorder %s39, 1
      %p342 = por %p340, %p341
      %p343 = scmp.ne.s32.totalorder %s335, %s338
      %p344 = scmp.eq.s32.totalorder %s39, 0
      %p345 = por %p343, %p344
      %p346 = scmp.ne.s32.totalorder %s335, %s338
      %p347 = scmp.eq.s32.totalorder %s44, 1
      %p348 = por %p346, %p347
      %p349 = scmp.ne.s32.totalorder %s338, %s339
      %p350 = scmp.eq.s32.totalorder %s44, 0
      %p351 = por %p349, %p350
      %p352 = scmp.ne.s32.totalorder %s338, %s339
      %p353 = scmp.eq.s32.totalorder %s45, 1
      %p354 = por %p352, %p353
      %p356 = scmp.ne.s32.totalorder %s339, %s355
      %p357 = scmp.eq.s32.totalorder %s45, 0
      %p358 = por %p356, %p357
      %s360 = sadd.s32 %s359, 1
      %p363 = scmp.eq.s32.totalorder %s39, 1
      %p364 = scmp.ne.s32.totalorder %s359, %s361
      %p365 = scmp.eq.s32.totalorder %s39, 0
      %p366 = por %p364, %p365
      %p367 = scmp.ne.s32.totalorder %s359, %s361
      %p368 = scmp.eq.s32.totalorder %s44, 1
      %p369 = por %p367, %p368
      %p370 = scmp.ne.s32.totalorder %s361, %s362
      %p371 = scmp.eq.s32.totalorder %s44, 0
      %p372 = por %p370, %p371
      %p373 = scmp.ne.s32.totalorder %s361, %s362
      %p374 = scmp.eq.s32.totalorder %s45, 1
      %p375 = por %p373, %p374
      %p377 = scmp.ne.s32.totalorder %s362, %s376
      %p378 = scmp.eq.s32.totalorder %s45, 0
      %p379 = por %p377, %p378
      %s381 = sadd.s32 %s380, 1
      %p384 = scmp.eq.s32.totalorder %s39, 1
      %p385 = scmp.ne.s32.totalorder %s380, %s382
      %p386 = scmp.eq.s32.totalorder %s39, 0
      %p387 = por %p385, %p386
      %p388 = scmp.ne.s32.totalorder %s380, %s382
      %p389 = scmp.eq.s32.totalorder %s44, 1
      %p390 = por %p388, %p389
      %p391 = scmp.ne.s32.totalorder %s382, %s383
      %p392 = scmp.eq.s32.totalorder %s44, 0
      %p393 = por %p391, %p392
      %p394 = scmp.ne.s32.totalorder %s382, %s383
      %p395 = scmp.eq.s32.totalorder %s45, 1
      %p396 = por %p394, %p395
      %p398 = scmp.ne.s32.totalorder %s383, %s397
      %p399 = scmp.eq.s32.totalorder %s45, 0
      %p400 = por %p398, %p399
      %s401 = ssub.s32 %s46, %s58
      %s402 = ssub.s32 %s47, %s54
      %s403 = sor.u32 %s401, %s402
      %p404 = scmp.eq.s32.totalorder %s403, 0
      %s406 = sadd.s32 %s405, 1
      %s407 = scalar_select %p404, %s405, %s406
      %p410 = pneg %p404
      %p411 = scmp.eq.s32.totalorder %s39, 1
      %p412 = por %p410, %p411
      %p413 = scmp.ne.s32.totalorder %s405, %s408
      %p414 = scmp.eq.s32.totalorder %s39, 0
      %p415 = por %p413, %p414
      %p416 = scmp.ne.s32.totalorder %s405, %s408
      %p417 = scmp.eq.s32.totalorder %s44, 1
      %p418 = por %p416, %p417
      %p419 = scmp.ne.s32.totalorder %s408, %s409
      %p420 = scmp.eq.s32.totalorder %s44, 0
      %p421 = por %p419, %p420
      %p422 = scmp.ne.s32.totalorder %s408, %s409
      %p423 = scmp.eq.s32.totalorder %s45, 1
      %p424 = por %p422, %p423
      %p426 = scmp.ne.s32.totalorder %s409, %s425
      %p427 = scmp.eq.s32.totalorder %s45, 0
      %p428 = por %p426, %p427
      %s429 = ssub.s32 %s46, %s58
      %s430 = ssub.s32 %s47, %s54
      %s431 = sor.u32 %s429, %s430
      %p432 = scmp.eq.s32.totalorder %s431, 0
      %s434 = sadd.s32 %s433, 1
      %s435 = scalar_select %p432, %s433, %s434
      %p438 = pneg %p432
      %p439 = scmp.eq.s32.totalorder %s39, 1
      %p440 = por %p438, %p439
      %p441 = scmp.ne.s32.totalorder %s433, %s436
      %p442 = scmp.eq.s32.totalorder %s39, 0
      %p443 = por %p441, %p442
      %p444 = scmp.ne.s32.totalorder %s433, %s436
      %p445 = scmp.eq.s32.totalorder %s44, 1
      %p446 = por %p444, %p445
      %p447 = scmp.ne.s32.totalorder %s436, %s437
      %p448 = scmp.eq.s32.totalorder %s44, 0
      %p449 = por %p447, %p448
      %p450 = scmp.ne.s32.totalorder %s436, %s437
      %p451 = scmp.eq.s32.totalorder %s45, 1
      %p452 = por %p450, %p451
      %p454 = scmp.ne.s32.totalorder %s437, %s453
      %p455 = scmp.eq.s32.totalorder %s45, 0
      %p456 = por %p454, %p455
      %p457 = scmp.le.s32.totalorder 1, %s39
      %p458 = scmp.lt.s32.totalorder %s39, 3
      %p459 = pnand %p457, %p458
      %p460 = pneg %p459
      // Predicated region
      $region9: #{tpu_custom_call.1} parent=5 // pred_check
        _
      $region10: #{tpu_custom_call.1} parent=5 // pred_check_branch
        %462 = sbr.rel (%p459) target = $region12
      $region11: #{tpu_custom_call.1} parent=5 // pred_region
        %s463 = ssub.s32 %s39, 1
        // Predicated region
        $region13: #{tpu_custom_call.1} parent=11 // pred_check
          %p464 = pneg %p152
        $region14: #{tpu_custom_call.1} parent=11 // pred_check_branch
          %466 = sbr.rel (%p464) target = $region16
        $region15: #{tpu_custom_call.1} parent=11 // pred_region
          %s468 = ssub.s32 512, 512
          %469 = vsyncadd [#allocation9], %s468
          %s470 = sshll.u32 [#allocation8], 4
          %s471 = int_to_ptr.vmem [resolvable:$true] %s470
          %476 = dma.hbm_to_vmem [thread:$0]  %s3, 512, %s471, [#allocation9], 128, 128, 8
        $region16: #{tpu_custom_call.1} parent=11 // pred_fallthru
          _
        // Predicated region
        $region17: #{tpu_custom_call.1} parent=11 // pred_check
          %p477 = pneg %p173
        $region18: #{tpu_custom_call.1} parent=11 // pred_check_branch
          %479 = sbr.rel (%p477) target = $region20
        $region19: #{tpu_custom_call.1} parent=11 // pred_region
          _
        $region20: #{tpu_custom_call.1} parent=11 // pred_fallthru
          _
        // Predicated region
        $region21: #{tpu_custom_call.1} parent=11 // pred_check
          %p480 = pneg %p194
        $region22: #{tpu_custom_call.1} parent=11 // pred_check_branch
          %482 = sbr.rel (%p480) target = $region24
        $region23: #{tpu_custom_call.1} parent=11 // pred_region
          %s484 = ssub.s32 512, 512
          %485 = vsyncadd [#allocation9], %s484
          %s486 = sshll.u32 [#allocation10], 4
          %s487 = int_to_ptr.vmem [resolvable:$true] %s486
          %492 = dma.hbm_to_vmem [thread:$0]  %s5, 512, %s487, [#allocation9], 128, 128, 8
        $region24: #{tpu_custom_call.1} parent=11 // pred_fallthru
          _
        // Predicated region
        $region25: #{tpu_custom_call.1} parent=11 // pred_check
          %p493 = pneg %p215
        $region26: #{tpu_custom_call.1} parent=11 // pred_check_branch
          %495 = sbr.rel (%p493) target = $region28
        $region27: #{tpu_custom_call.1} parent=11 // pred_region
          %s497 = ssub.s32 16, 16
          %498 = vsyncadd [#allocation12], %s497
          %s500 = sshll.u32 [#allocation11], 4
          %s501 = int_to_ptr.vmem [resolvable:$true] %s500
          %503 = dma.hbm_to_vmem [thread:$0]  %s6, 16, %s501, [#allocation12]
        $region28: #{tpu_custom_call.1} parent=11 // pred_fallthru
          _
        // Predicated region
        $region29: #{tpu_custom_call.1} parent=11 // pred_check
          %p504 = pneg %p236
        $region30: #{tpu_custom_call.1} parent=11 // pred_check_branch
          %506 = sbr.rel (%p504) target = $region32
        $region31: #{tpu_custom_call.1} parent=11 // pred_region
          %s508 = ssub.s32 512, 512
          %509 = vsyncadd [#allocation12], %s508
          %s510 = sshll.u32 [#allocation13], 4
          %s511 = int_to_ptr.vmem [resolvable:$true] %s510
          %516 = dma.hbm_to_vmem [thread:$0]  %s7, 512, %s511, [#allocation12], 128, 128, 8
        $region32: #{tpu_custom_call.1} parent=11 // pred_fallthru
          _
        // Predicated region
        $region33: #{tpu_custom_call.1} parent=11 // pred_check
          %p517 = pneg %p257
        $region34: #{tpu_custom_call.1} parent=11 // pred_check_branch
          %519 = sbr.rel (%p517) target = $region36
        $region35: #{tpu_custom_call.1} parent=11 // pred_region
          %s521 = ssub.s32 16, 16
          %522 = vsyncadd [#allocation15], %s521
          %s524 = sshll.u32 [#allocation14], 4
          %s525 = int_to_ptr.vmem [resolvable:$true] %s524
          %527 = dma.hbm_to_vmem [thread:$0]  %s8, 16, %s525, [#allocation15]
        $region36: #{tpu_custom_call.1} parent=11 // pred_fallthru
          _
        // Predicated region
        $region37: #{tpu_custom_call.1} parent=11 // pred_check
          %p528 = pneg %p278
        $region38: #{tpu_custom_call.1} parent=11 // pred_check_branch
          %530 = sbr.rel (%p528) target = $region40
        $region39: #{tpu_custom_call.1} parent=11 // pred_region
          _
        $region40: #{tpu_custom_call.1} parent=11 // pred_fallthru
          _
        // Predicated region
        $region41: #{tpu_custom_call.1} parent=11 // pred_check
          %p531 = pneg %p299
        $region42: #{tpu_custom_call.1} parent=11 // pred_check_branch
          %533 = sbr.rel (%p531) target = $region44
        $region43: #{tpu_custom_call.1} parent=11 // pred_region
          %s535 = ssub.s32 16, 16
          %536 = vsyncadd [#allocation15], %s535
          %s538 = sshll.u32 [#allocation16], 4
          %s539 = int_to_ptr.vmem [resolvable:$true] %s538
          %541 = dma.hbm_to_vmem [thread:$0]  %s10, 16, %s539, [#allocation15]
        $region44: #{tpu_custom_call.1} parent=11 // pred_fallthru
          _
        // Predicated region
        $region45: #{tpu_custom_call.1} parent=11 // pred_check
          %p542 = pneg %p325
        $region46: #{tpu_custom_call.1} parent=11 // pred_check_branch
          %544 = sbr.rel (%p542) target = $region48
        $region47: #{tpu_custom_call.1} parent=11 // pred_region
          %p545 = scmp.lt.s32.totalorder %s49, 0
          %s546 = scalar_select %p545, %s49, 0
          %s547 = smul.addr %s546, 8
          %s548 = scalar_lea.vmem %s11, %s547
        $region48: #{tpu_custom_call.1} parent=11 // pred_fallthru
          _
        // Predicated region
        $region49: #{tpu_custom_call.1} parent=11 // pred_check
          %p549 = pneg %p351
        $region50: #{tpu_custom_call.1} parent=11 // pred_check_branch
          %551 = sbr.rel (%p549) target = $region52
        $region51: #{tpu_custom_call.1} parent=11 // pred_region
          %s553 = ssub.s32 128, 128
          %554 = vsyncadd [#allocation18], %s553
          %s555 = smul.addr %s49, 128
          %s556 = scalar_lea.hbm %s12, %s555
          %s558 = sshll.u32 [#allocation17], 4
          %s559 = int_to_ptr.vmem [resolvable:$true] %s558
          %561 = dma.hbm_to_vmem [thread:$0]  %s556, 128, %s559, [#allocation18]
        $region52: #{tpu_custom_call.1} parent=11 // pred_fallthru
          _
        // Predicated region
        $region53: #{tpu_custom_call.1} parent=11 // pred_check
          %p562 = pneg %p372
        $region54: #{tpu_custom_call.1} parent=11 // pred_check_branch
          %564 = sbr.rel (%p562) target = $region56
        $region55: #{tpu_custom_call.1} parent=11 // pred_region
          _
        $region56: #{tpu_custom_call.1} parent=11 // pred_fallthru
          _
        // Predicated region
        $region57: #{tpu_custom_call.1} parent=11 // pred_check
          %p565 = pneg %p393
        $region58: #{tpu_custom_call.1} parent=11 // pred_check_branch
          %567 = sbr.rel (%p565) target = $region60
        $region59: #{tpu_custom_call.1} parent=11 // pred_region
          %s569 = ssub.s32 128, 128
          %570 = vsyncadd [#allocation18], %s569
          %s572 = sshll.u32 [#allocation19], 4
          %s573 = int_to_ptr.vmem [resolvable:$true] %s572
          %575 = dma.hbm_to_vmem [thread:$0]  %s14, 128, %s573, [#allocation18]
        $region60: #{tpu_custom_call.1} parent=11 // pred_fallthru
          _
      $region12: #{tpu_custom_call.1} parent=5 // pred_fallthru
        _
      %p576 = scmp.lt.s32.totalorder %s39, 2
      // Predicated region
      $region61: #{tpu_custom_call.1} parent=5 // pred_check
        %p577 = pneg %p576
      $region62: #{tpu_custom_call.1} parent=5 // pred_check_branch
        %579 = sbr.rel (%p577) target = $region64
      $region63: #{tpu_custom_call.1} parent=5 // pred_region
        // Predicated region
        $region65: #{tpu_custom_call.1} parent=63 // pred_check
          %p580 = pneg %p73
        $region66: #{tpu_custom_call.1} parent=63 // pred_check_branch
          %582 = sbr.rel (%p580) target = $region68
        $region67: #{tpu_custom_call.1} parent=63 // pred_region
          %s583 = sand.u32 %s63, 1
          %s584 = scalar_lea.sflag [#allocation3], %s583
          %s585 = sand.u32 %s63, 1
          %s586 = smul.addr %s585, 8
          %s587 = scalar_lea.vmem [#allocation2], %s586
          %s589 = ssub.s32 128, 128
          %590 = vsyncadd %s584, %s589
          %s591 = sadd.s32 %s47, %s46
          %s592 = smul.addr %s591, 128
          %s593 = scalar_lea.hbm %s0, %s592
          %s595 = sshll.u32 %s587, 4
          %s596 = int_to_ptr.vmem [resolvable:$true] %s595
          %598 = dma.hbm_to_vmem [thread:$0]  %s593, 128, %s596, %s584
        $region68: #{tpu_custom_call.1} parent=63 // pred_fallthru
          _
        // Predicated region
        $region69: #{tpu_custom_call.1} parent=63 // pred_check
          %p599 = pneg %p99
        $region70: #{tpu_custom_call.1} parent=63 // pred_check_branch
          %601 = sbr.rel (%p599) target = $region72
        $region71: #{tpu_custom_call.1} parent=63 // pred_region
          %s602 = sand.u32 %s39, 1
          %s603 = scalar_lea.sflag [#allocation6], %s602
          %s604 = sand.u32 %s89, 1
          %s605 = smul.addr %s604, 8
          %s606 = scalar_lea.vmem [#allocation5], %s605
          %s608 = ssub.s32 128, 128
          %609 = vsyncadd %s603, %s608
          %s610 = smul.addr %s46, 128
          %s611 = scalar_lea.hbm %s1, %s610
          %s613 = sshll.u32 %s606, 4
          %s614 = int_to_ptr.vmem [resolvable:$true] %s613
          %616 = dma.hbm_to_vmem [thread:$0]  %s611, 128, %s614, %s603
        $region72: #{tpu_custom_call.1} parent=63 // pred_fallthru
          _
        // Predicated region
        $region73: #{tpu_custom_call.1} parent=63 // pred_check
          %p617 = pneg %p125
        $region74: #{tpu_custom_call.1} parent=63 // pred_check_branch
          %619 = sbr.rel (%p617) target = $region76
        $region75: #{tpu_custom_call.1} parent=63 // pred_region
          %s620 = sand.u32 %s39, 1
          %s621 = scalar_lea.sflag [#allocation6], %s620
          %s622 = sand.u32 %s115, 1
          %s623 = smul.addr %s622, 8
          %s624 = scalar_lea.vmem [#allocation7], %s623
          %s626 = ssub.s32 128, 128
          %627 = vsyncadd %s621, %s626
          %s628 = smul.addr %s46, 128
          %s629 = scalar_lea.hbm %s2, %s628
          %s631 = sshll.u32 %s624, 4
          %s632 = int_to_ptr.vmem [resolvable:$true] %s631
          %634 = dma.hbm_to_vmem [thread:$0]  %s629, 128, %s632, %s621
        $region76: #{tpu_custom_call.1} parent=63 // pred_fallthru
          _
      $region64: #{tpu_custom_call.1} parent=5 // pred_fallthru
        _
      %p635 = scmp.le.s32.totalorder 1, %s39
      %p636 = scmp.lt.s32.totalorder %s39, 3
      %p637 = pnand %p635, %p636
      %p638 = pneg %p637
      // Predicated region
      $region77: #{tpu_custom_call.1} parent=5 // pred_check
        _
      $region78: #{tpu_custom_call.1} parent=5 // pred_check_branch
        %640 = sbr.rel (%p637) target = $region80
      $region79: #{tpu_custom_call.1} parent=5 // pred_region
        %s641 = ssub.s32 %s39, 1
        %s642 = sand.u32 %s66, 1
        %s643 = scalar_lea.sflag [#allocation3], %s642
        %s644 = sand.u32 %s66, 1
        %s645 = smul.addr %s644, 8
        %s646 = scalar_lea.vmem [#allocation2], %s645
        // Predicated region
        $region81: #{tpu_custom_call.1} parent=79 // pred_check
          %p647 = pneg %p79
        $region82: #{tpu_custom_call.1} parent=79 // pred_check_branch
          %649 = sbr.rel (%p647) target = $region84
        $region83: #{tpu_custom_call.1} parent=79 // pred_region
          %650 = dma.done %s643, 128
        $region84: #{tpu_custom_call.1} parent=79 // pred_fallthru
          _
        %s651 = sand.u32 %s44, 1
        %s652 = scalar_lea.sflag [#allocation6], %s651
        %s653 = sand.u32 %s92, 1
        %s654 = smul.addr %s653, 8
        %s655 = scalar_lea.vmem [#allocation5], %s654
        // Predicated region
        $region85: #{tpu_custom_call.1} parent=79 // pred_check
          %p656 = pneg %p105
        $region86: #{tpu_custom_call.1} parent=79 // pred_check_branch
          %658 = sbr.rel (%p656) target = $region88
        $region87: #{tpu_custom_call.1} parent=79 // pred_region
          %659 = dma.done %s652, 128
        $region88: #{tpu_custom_call.1} parent=79 // pred_fallthru
          _
        %s660 = sand.u32 %s44, 1
        %s661 = scalar_lea.sflag [#allocation6], %s660
        %s662 = sand.u32 %s118, 1
        %s663 = smul.addr %s662, 8
        %s664 = scalar_lea.vmem [#allocation7], %s663
        // Predicated region
        $region89: #{tpu_custom_call.1} parent=79 // pred_check
          %p665 = pneg %p131
        $region90: #{tpu_custom_call.1} parent=79 // pred_check_branch
          %667 = sbr.rel (%p665) target = $region92
        $region91: #{tpu_custom_call.1} parent=79 // pred_region
          %668 = dma.done %s661, 128
        $region92: #{tpu_custom_call.1} parent=79 // pred_fallthru
          _
        // Predicated region
        $region93: #{tpu_custom_call.1} parent=79 // pred_check
          %p669 = pneg %p152
        $region94: #{tpu_custom_call.1} parent=79 // pred_check_branch
          %671 = sbr.rel (%p669) target = $region96
        $region95: #{tpu_custom_call.1} parent=79 // pred_region
          %672 = dma.done [#allocation9], 512
        $region96: #{tpu_custom_call.1} parent=79 // pred_fallthru
          _
        // Predicated region
        $region97: #{tpu_custom_call.1} parent=79 // pred_check
          %p673 = pneg %p194
        $region98: #{tpu_custom_call.1} parent=79 // pred_check_branch
          %675 = sbr.rel (%p673) target = $region100
        $region99: #{tpu_custom_call.1} parent=79 // pred_region
          %676 = dma.done [#allocation9], 512
        $region100: #{tpu_custom_call.1} parent=79 // pred_fallthru
          _
        // Predicated region
        $region101: #{tpu_custom_call.1} parent=79 // pred_check
          %p677 = pneg %p215
        $region102: #{tpu_custom_call.1} parent=79 // pred_check_branch
          %679 = sbr.rel (%p677) target = $region104
        $region103: #{tpu_custom_call.1} parent=79 // pred_region
          %680 = dma.done [#allocation12], 16
        $region104: #{tpu_custom_call.1} parent=79 // pred_fallthru
          _
        // Predicated region
        $region105: #{tpu_custom_call.1} parent=79 // pred_check
          %p681 = pneg %p236
        $region106: #{tpu_custom_call.1} parent=79 // pred_check_branch
          %683 = sbr.rel (%p681) target = $region108
        $region107: #{tpu_custom_call.1} parent=79 // pred_region
          %684 = dma.done [#allocation12], 512
        $region108: #{tpu_custom_call.1} parent=79 // pred_fallthru
          _
        // Predicated region
        $region109: #{tpu_custom_call.1} parent=79 // pred_check
          %p685 = pneg %p257
        $region110: #{tpu_custom_call.1} parent=79 // pred_check_branch
          %687 = sbr.rel (%p685) target = $region112
        $region111: #{tpu_custom_call.1} parent=79 // pred_region
          %688 = dma.done [#allocation15], 16
        $region112: #{tpu_custom_call.1} parent=79 // pred_fallthru
          _
        // Predicated region
        $region113: #{tpu_custom_call.1} parent=79 // pred_check
          %p689 = pneg %p299
        $region114: #{tpu_custom_call.1} parent=79 // pred_check_branch
          %691 = sbr.rel (%p689) target = $region116
        $region115: #{tpu_custom_call.1} parent=79 // pred_region
          %692 = dma.done [#allocation15], 16
        $region116: #{tpu_custom_call.1} parent=79 // pred_fallthru
          _
        // Predicated region
        $region117: #{tpu_custom_call.1} parent=79 // pred_check
          %p693 = pneg %p351
        $region118: #{tpu_custom_call.1} parent=79 // pred_check_branch
          %695 = sbr.rel (%p693) target = $region120
        $region119: #{tpu_custom_call.1} parent=79 // pred_region
          %696 = dma.done [#allocation18], 128
        $region120: #{tpu_custom_call.1} parent=79 // pred_fallthru
          _
        // Predicated region
        $region121: #{tpu_custom_call.1} parent=79 // pred_check
          %p697 = pneg %p393
        $region122: #{tpu_custom_call.1} parent=79 // pred_check_branch
          %699 = sbr.rel (%p697) target = $region124
        $region123: #{tpu_custom_call.1} parent=79 // pred_region
          %700 = dma.done [#allocation18], 128
        $region124: #{tpu_custom_call.1} parent=79 // pred_fallthru
          _
        %s701 = sand.u32 %s66, 1
        %s702 = scalar_lea.sflag [#allocation3], %s701
        %s703 = sand.u32 %s66, 1
        %s704 = smul.addr %s703, 8
        %s705 = scalar_lea.vmem [#allocation2], %s704
        %p706 = pneg %p79
        %p707 = pneg %p76
        %s708 = sand.u32 %s44, 1
        %s709 = scalar_lea.sflag [#allocation6], %s708
        %s710 = sand.u32 %s92, 1
        %s711 = smul.addr %s710, 8
        %s712 = scalar_lea.vmem [#allocation5], %s711
        %p713 = pneg %p105
        %p714 = pneg %p102
        %s715 = sand.u32 %s44, 1
        %s716 = scalar_lea.sflag [#allocation6], %s715
        %s717 = sand.u32 %s118, 1
        %s718 = smul.addr %s717, 8
        %s719 = scalar_lea.vmem [#allocation7], %s718
        %p720 = pneg %p131
        %p721 = pneg %p128
        %p722 = pneg %p152
        %p723 = pneg %p149
        %p724 = pneg %p173
        %p725 = pneg %p170
        %p726 = pneg %p194
        %p727 = pneg %p191
        %p728 = pneg %p215
        %p729 = pneg %p212
        %p730 = pneg %p236
        %p731 = pneg %p233
        %p732 = pneg %p257
        %p733 = pneg %p254
        %p734 = pneg %p278
        %p735 = pneg %p275
        %p736 = pneg %p299
        %p737 = pneg %p296
        %p738 = scmp.lt.s32.totalorder %s49, 0
        %s739 = scalar_select %p738, %s49, 0
        %s740 = smul.addr %s739, 8
        %s741 = scalar_lea.vmem %s11, %s740
        %p742 = pneg %p325
        %p743 = pneg %p322
        %p744 = pneg %p351
        %p745 = pneg %p348
        %p746 = pneg %p372
        %p747 = pneg %p369
        %p748 = pneg %p393
        %p749 = pneg %p390
        %p750 = pneg %p421
        %p751 = pneg %p418
        %s752 = sand.u32 %s408, 1
        %s753 = scalar_lea.sflag [#allocation4], %s752
        %s754 = sand.u32 %s408, 1
        %s755 = smul.addr %s754, 8
        %s756 = scalar_lea.vmem [#allocation20], %s755
        %p757 = pneg %p449
        %p758 = pneg %p446
        %s759 = sand.u32 %s436, 1
        %s760 = scalar_lea.sflag [#allocation22], %s759
        %s761 = sand.u32 %s436, 1
        %s762 = smul.addr %s761, 32
        %s763 = scalar_lea.vmem [#allocation21], %s762
        %p764 = scmp.lt.s32.totalorder %s49, 0
        %s765 = scalar_select %p764, %s49, 0
        %s766 = smul.addr %s765, 8
        %s767 = scalar_lea.vmem %s11, %s766
        %v768 = vld [vmem:[%s646] sm:$0xff]
        %v769 = vld [vmem:[%s655] sm:$0xff]
        %v770 = vld [vmem:[%s664] sm:$0xff]
        %v771 = vld [vmem:[#allocation8] sm:$0xff]
        %v772 = vld [vmem:[#allocation8 + $0x8] sm:$0xff]
        %v773 = vld [vmem:[#allocation8 + $0x10] sm:$0xff]
        %v774 = vld [vmem:[#allocation8 + $0x18] sm:$0xff]
        %v775 = vld [vmem:[%s4] sm:$0x1]
        %v777 = vlaneseq
        %v778 = vshrl.u32 %v777, 7
        %v779 = vsub.s32 0, %v778
        %v780 = vrot.slane %v775, %v779
        %vm782 = vcmask 261120
        %v784 = vsel %vm782, %v768, 0
        %786 = vmatprep.subr.mxu0 0.0
        %787 = vmatpush1.msra.mxu0 %v771
        %788 = vmatprep.subr.mxu0 0.0
        %789 = vmatpush1.msra.mxu0 %v772
        %790 = vmatprep.subr.mxu0 0.0
        %791 = vmatpush1.msra.mxu0 %v773
        %792 = vmatprep.subr.mxu0 0.0
        %793 = vmatpush1.msra.mxu0 %v774
        %794 = vmatprep.subr.mxu0 0.0
        %795 = vmatpush1.msra.mxu0 0.0
        %796 = vmatprep.subr.mxu0 0.0
        %797 = vmatpush1.msra.mxu0 0.0
        %798 = vmatprep.subr.mxu0 0.0
        %799 = vmatpush1.msra.mxu0 0.0
        %800 = vmatprep.subr.mxu0 0.0
        %801 = vmatpush1.msra.mxu0 0.0
        %802 = vmatprep.subr.mxu0 0.0
        %803 = vmatpush1.msra.mxu0 0.0
        %804 = vmatprep.subr.mxu0 0.0
        %805 = vmatpush1.msra.mxu0 0.0
        %806 = vmatprep.subr.mxu0 0.0
        %807 = vmatpush1.msra.mxu0 0.0
        %808 = vmatprep.subr.mxu0 0.0
        %809 = vmatpush1.msra.mxu0 0.0
        %810 = vmatprep.subr.mxu0 0.0
        %811 = vmatpush1.msra.mxu0 0.0
        %812 = vmatprep.subr.mxu0 0.0
        %813 = vmatpush1.msra.mxu0 0.0
        %814 = vmatprep.subr.mxu0 0.0
        %815 = vmatpush1.msra.mxu0 0.0
        %816 = vmatprep.subr.mxu0 0.0
        %817 = vmatpush1.msra.mxu0 0.0
        %818 = vmatprep.subr.mxu0 0.0
        %819 = vmatpush1.msra.mxu0 0.0
        %820 = vmatprep.subr.mxu0 0.0
        %821 = vmatpush1.msra.mxu0 0.0
        %822 = vmatprep.subr.mxu0 0.0
        %823 = vmatpush1.msra.mxu0 0.0
        %824 = vmatprep.subr.mxu0 0.0
        %825 = vmatpush1.msra.mxu0 0.0
        %826 = vmatprep.subr.mxu0 0.0
        %827 = vmatpush1.msra.mxu0 0.0
        %828 = vmatprep.subr.mxu0 0.0
        %829 = vmatpush1.msra.mxu0 0.0
        %830 = vmatprep.subr.mxu0 0.0
        %831 = vmatpush1.msra.mxu0 0.0
        %832 = vmatprep.subr.mxu0 0.0
        %833 = vmatpush1.msra.mxu0 0.0
        %834 = vmatprep.subr.mxu0 0.0
        %835 = vmatpush1.msra.mxu0 0.0
        %836 = vmatprep.subr.mxu0 0.0
        %837 = vmatpush1.msra.mxu0 0.0
        %838 = vmatprep.subr.mxu0 0.0
        %839 = vmatpush1.msra.mxu0 0.0
        %840 = vmatprep.subr.mxu0 0.0
        %841 = vmatpush1.msra.mxu0 0.0
        %842 = vmatprep.subr.mxu0 0.0
        %843 = vmatpush1.msra.mxu0 0.0
        %844 = vmatprep.subr.mxu0 0.0
        %845 = vmatpush1.msra.mxu0 0.0
        %846 = vmatprep.subr.mxu0 0.0
        %847 = vmatpush1.msra.mxu0 0.0
        %848 = vmatprep.subr.mxu0 0.0
        %849 = vmatpush1.msra.mxu0 0.0
        %850 = vmatprep.mubr.f32.mxu0 0.0
        %851 = vmatmul.mubr.f32.gmra.mrb[0].mxu0 %v784
        %v852 = vpop.f32.mrb[0].mxu0
        %v853 = vadd.f32 %v780, %v852
        %v854 = vpop.f32.mrb[0].mxu0
        %855 = vdwg.mxu0
        %v856 = vld [vmem:[#allocation10] sm:$0xff]
        %v857 = vld [vmem:[#allocation10 + $0x8] sm:$0xff]
        %v858 = vld [vmem:[#allocation10 + $0x10] sm:$0xff]
        %v859 = vld [vmem:[#allocation10 + $0x18] sm:$0xff]
        %v860 = vld [vmem:[#allocation11] sm:$0x1]
        %v862 = vlaneseq
        %v863 = vshrl.u32 %v862, 7
        %v864 = vsub.s32 0, %v863
        %v865 = vrot.slane %v860, %v864
        %v868 = vsel %vm782, %v769, 0
        %870 = vmatprep.subr.mxu0 0.0
        %871 = vmatpush1.msra.mxu0 %v856
        %872 = vmatprep.subr.mxu0 0.0
        %873 = vmatpush1.msra.mxu0 %v857
        %874 = vmatprep.subr.mxu0 0.0
        %875 = vmatpush1.msra.mxu0 %v858
        %876 = vmatprep.subr.mxu0 0.0
        %877 = vmatpush1.msra.mxu0 %v859
        %878 = vmatprep.subr.mxu0 0.0
        %879 = vmatpush1.msra.mxu0 0.0
        %880 = vmatprep.subr.mxu0 0.0
        %881 = vmatpush1.msra.mxu0 0.0
        %882 = vmatprep.subr.mxu0 0.0
        %883 = vmatpush1.msra.mxu0 0.0
        %884 = vmatprep.subr.mxu0 0.0
        %885 = vmatpush1.msra.mxu0 0.0
        %886 = vmatprep.subr.mxu0 0.0
        %887 = vmatpush1.msra.mxu0 0.0
        %888 = vmatprep.subr.mxu0 0.0
        %889 = vmatpush1.msra.mxu0 0.0
        %890 = vmatprep.subr.mxu0 0.0
        %891 = vmatpush1.msra.mxu0 0.0
        %892 = vmatprep.subr.mxu0 0.0
        %893 = vmatpush1.msra.mxu0 0.0
        %894 = vmatprep.subr.mxu0 0.0
        %895 = vmatpush1.msra.mxu0 0.0
        %896 = vmatprep.subr.mxu0 0.0
        %897 = vmatpush1.msra.mxu0 0.0
        %898 = vmatprep.subr.mxu0 0.0
        %899 = vmatpush1.msra.mxu0 0.0
        %900 = vmatprep.subr.mxu0 0.0
        %901 = vmatpush1.msra.mxu0 0.0
        %902 = vmatprep.subr.mxu0 0.0
        %903 = vmatpush1.msra.mxu0 0.0
        %904 = vmatprep.subr.mxu0 0.0
        %905 = vmatpush1.msra.mxu0 0.0
        %906 = vmatprep.subr.mxu0 0.0
        %907 = vmatpush1.msra.mxu0 0.0
        %908 = vmatprep.subr.mxu0 0.0
        %909 = vmatpush1.msra.mxu0 0.0
        %910 = vmatprep.subr.mxu0 0.0
        %911 = vmatpush1.msra.mxu0 0.0
        %912 = vmatprep.subr.mxu0 0.0
        %913 = vmatpush1.msra.mxu0 0.0
        %914 = vmatprep.subr.mxu0 0.0
        %915 = vmatpush1.msra.mxu0 0.0
        %916 = vmatprep.subr.mxu0 0.0
        %917 = vmatpush1.msra.mxu0 0.0
        %918 = vmatprep.subr.mxu0 0.0
        %919 = vmatpush1.msra.mxu0 0.0
        %920 = vmatprep.subr.mxu0 0.0
        %921 = vmatpush1.msra.mxu0 0.0
        %922 = vmatprep.subr.mxu0 0.0
        %923 = vmatpush1.msra.mxu0 0.0
        %924 = vmatprep.subr.mxu0 0.0
        %925 = vmatpush1.msra.mxu0 0.0
        %926 = vmatprep.subr.mxu0 0.0
        %927 = vmatpush1.msra.mxu0 0.0
        %928 = vmatprep.subr.mxu0 0.0
        %929 = vmatpush1.msra.mxu0 0.0
        %930 = vmatprep.subr.mxu0 0.0
        %931 = vmatpush1.msra.mxu0 0.0
        %932 = vmatprep.subr.mxu0 0.0
        %933 = vmatpush1.msra.mxu0 0.0
        %934 = vmatprep.mubr.f32.mxu0 0.0
        %935 = vmatmul.mubr.f32.gmra.mrb[0].mxu0 %v868
        %v936 = vpop.f32.mrb[0].mxu0
        %v937 = vadd.f32 %v865, %v936
        %v938 = vpop.f32.mrb[0].mxu0
        %939 = vdwg.mxu0
        %v940 = vld [vmem:[#allocation13] sm:$0xff]
        %v941 = vld [vmem:[#allocation13 + $0x8] sm:$0xff]
        %v942 = vld [vmem:[#allocation13 + $0x10] sm:$0xff]
        %v943 = vld [vmem:[#allocation13 + $0x18] sm:$0xff]
        %v944 = vld [vmem:[#allocation14] sm:$0x1]
        %v946 = vlaneseq
        %v947 = vshrl.u32 %v946, 7
        %v948 = vsub.s32 0, %v947
        %v949 = vrot.slane %v944, %v948
        %v952 = vsel %vm782, %v770, 0
        %954 = vmatprep.subr.mxu0 0.0
        %955 = vmatpush1.msra.mxu0 %v940
        %956 = vmatprep.subr.mxu0 0.0
        %957 = vmatpush1.msra.mxu0 %v941
        %958 = vmatprep.subr.mxu0 0.0
        %959 = vmatpush1.msra.mxu0 %v942
        %960 = vmatprep.subr.mxu0 0.0
        %961 = vmatpush1.msra.mxu0 %v943
        %962 = vmatprep.subr.mxu0 0.0
        %963 = vmatpush1.msra.mxu0 0.0
        %964 = vmatprep.subr.mxu0 0.0
        %965 = vmatpush1.msra.mxu0 0.0
        %966 = vmatprep.subr.mxu0 0.0
        %967 = vmatpush1.msra.mxu0 0.0
        %968 = vmatprep.subr.mxu0 0.0
        %969 = vmatpush1.msra.mxu0 0.0
        %970 = vmatprep.subr.mxu0 0.0
        %971 = vmatpush1.msra.mxu0 0.0
        %972 = vmatprep.subr.mxu0 0.0
        %973 = vmatpush1.msra.mxu0 0.0
        %974 = vmatprep.subr.mxu0 0.0
        %975 = vmatpush1.msra.mxu0 0.0
        %976 = vmatprep.subr.mxu0 0.0
        %977 = vmatpush1.msra.mxu0 0.0
        %978 = vmatprep.subr.mxu0 0.0
        %979 = vmatpush1.msra.mxu0 0.0
        %980 = vmatprep.subr.mxu0 0.0
        %981 = vmatpush1.msra.mxu0 0.0
        %982 = vmatprep.subr.mxu0 0.0
        %983 = vmatpush1.msra.mxu0 0.0
        %984 = vmatprep.subr.mxu0 0.0
        %985 = vmatpush1.msra.mxu0 0.0
        %986 = vmatprep.subr.mxu0 0.0
        %987 = vmatpush1.msra.mxu0 0.0
        %988 = vmatprep.subr.mxu0 0.0
        %989 = vmatpush1.msra.mxu0 0.0
        %990 = vmatprep.subr.mxu0 0.0
        %991 = vmatpush1.msra.mxu0 0.0
        %992 = vmatprep.subr.mxu0 0.0
        %993 = vmatpush1.msra.mxu0 0.0
        %994 = vmatprep.subr.mxu0 0.0
        %995 = vmatpush1.msra.mxu0 0.0
        %996 = vmatprep.subr.mxu0 0.0
        %997 = vmatpush1.msra.mxu0 0.0
        %998 = vmatprep.subr.mxu0 0.0
        %999 = vmatpush1.msra.mxu0 0.0
        %1000 = vmatprep.subr.mxu0 0.0
        %1001 = vmatpush1.msra.mxu0 0.0
        %1002 = vmatprep.subr.mxu0 0.0
        %1003 = vmatpush1.msra.mxu0 0.0
        %1004 = vmatprep.subr.mxu0 0.0
        %1005 = vmatpush1.msra.mxu0 0.0
        %1006 = vmatprep.subr.mxu0 0.0
        %1007 = vmatpush1.msra.mxu0 0.0
        %1008 = vmatprep.subr.mxu0 0.0
        %1009 = vmatpush1.msra.mxu0 0.0
        %1010 = vmatprep.subr.mxu0 0.0
        %1011 = vmatpush1.msra.mxu0 0.0
        %1012 = vmatprep.subr.mxu0 0.0
        %1013 = vmatpush1.msra.mxu0 0.0
        %1014 = vmatprep.subr.mxu0 0.0
        %1015 = vmatpush1.msra.mxu0 0.0
        %1016 = vmatprep.subr.mxu0 0.0
        %1017 = vmatpush1.msra.mxu0 0.0
        %1018 = vmatprep.mubr.f32.mxu0 0.0
        %1019 = vmatmul.mubr.f32.gmra.mrb[0].mxu0 %v952
        %v1020 = vpop.f32.mrb[0].mxu0
        %v1021 = vadd.f32 %v949, %v1020
        %v1022 = vpop.f32.mrb[0].mxu0
        %1023 = vdwg.mxu0
        %1025 = vrot.lane.b32.xlu0 %v853, 120
        %v1026 = vpop.permute.xlu0 %1025
        %1028 = vrot.lane.b32.xlu0 %v853, 112
        %v1029 = vpop.permute.xlu0 %1028
        %1031 = vrot.lane.b32.xlu0 %v853, 104
        %v1032 = vpop.permute.xlu0 %1031
        %1035 = vrot.lane.b32.xlu0 %v937, 120
        %v1036 = vpop.permute.xlu0 %1035
        %1038 = vrot.lane.b32.xlu0 %v937, 112
        %v1039 = vpop.permute.xlu0 %1038
        %1041 = vrot.lane.b32.xlu0 %v937, 104
        %v1042 = vpop.permute.xlu0 %1041
        %1045 = vrot.lane.b32.xlu0 %v1021, 120
        %v1046 = vpop.permute.xlu0 %1045
        %1048 = vrot.lane.b32.xlu0 %v1021, 112
        %v1049 = vpop.permute.xlu0 %1048
        %1051 = vrot.lane.b32.xlu0 %v1021, 104
        %v1052 = vpop.permute.xlu0 %1051
        %v1054 = vld [vmem:[%s767] sm:$0xff]
        %v1055 = vld [vmem:[#allocation17] sm:$0xff]
        %1056 = vrot.lane.b32.xlu0 %v853, 124
        %v1057 = vpop.permute.xlu0 %1056
        %1058 = vrot.lane.b32.xlu0 %v1026, 124
        %v1059 = vpop.permute.xlu0 %1058
        %1060 = vrot.lane.b32.xlu0 %v1029, 124
        %v1061 = vpop.permute.xlu0 %1060
        %1062 = vrot.lane.b32.xlu0 %v1032, 124
        %v1063 = vpop.permute.xlu0 %1062
        %1068 = vrot.lane.b32.xlu0 %v853, 4
        %v1069 = vpop.permute.xlu0 %1068
        %1070 = vrot.lane.b32.xlu0 %v1026, 4
        %v1071 = vpop.permute.xlu0 %1070
        %1072 = vrot.lane.b32.xlu0 %v1029, 4
        %v1073 = vpop.permute.xlu0 %1072
        %1074 = vrot.lane.b32.xlu0 %v1032, 4
        %v1075 = vpop.permute.xlu0 %1074
        %vm1080 = vcmask 31744
        %v1081 = vsel %vm1080, %v1057, %v1069
        %v1082 = vsel %vm1080, %v1059, %v1071
        %v1083 = vsel %vm1080, %v1061, %v1073
        %v1084 = vsel %vm1080, %v1063, %v1075
        %v1085 = vmul.f32 %v853, %v1054
        %v1086 = vmul.f32 %v1026, %v1054
        %v1087 = vmul.f32 %v1029, %v1054
        %v1088 = vmul.f32 %v1032, %v1054
        %v1089 = vmul.f32 %v1081, %v1055
        %v1090 = vmul.f32 %v1082, %v1055
        %v1091 = vmul.f32 %v1083, %v1055
        %v1092 = vmul.f32 %v1084, %v1055
        %v1093 = vadd.f32 %v1085, %v1089
        %v1094 = vadd.f32 %v1086, %v1090
        %v1095 = vadd.f32 %v1087, %v1091
        %v1096 = vadd.f32 %v1088, %v1092
        %v1097 = vld [vmem:[%s13] sm:$0xff]
        %v1098 = vld [vmem:[#allocation19] sm:$0xff]
        %1099 = vrot.lane.b32.xlu0 %v937, 124
        %v1100 = vpop.permute.xlu0 %1099
        %1101 = vrot.lane.b32.xlu0 %v1036, 124
        %v1102 = vpop.permute.xlu0 %1101
        %1103 = vrot.lane.b32.xlu0 %v1039, 124
        %v1104 = vpop.permute.xlu0 %1103
        %1105 = vrot.lane.b32.xlu0 %v1042, 124
        %v1106 = vpop.permute.xlu0 %1105
        %1111 = vrot.lane.b32.xlu0 %v937, 4
        %v1112 = vpop.permute.xlu0 %1111
        %1113 = vrot.lane.b32.xlu0 %v1036, 4
        %v1114 = vpop.permute.xlu0 %1113
        %1115 = vrot.lane.b32.xlu0 %v1039, 4
        %v1116 = vpop.permute.xlu0 %1115
        %1117 = vrot.lane.b32.xlu0 %v1042, 4
        %v1118 = vpop.permute.xlu0 %1117
        %v1123 = vsel %vm1080, %v1100, %v1112
        %v1124 = vsel %vm1080, %v1102, %v1114
        %v1125 = vsel %vm1080, %v1104, %v1116
        %v1126 = vsel %vm1080, %v1106, %v1118
        %v1127 = vmul.f32 %v937, %v1097
        %v1128 = vmul.f32 %v1036, %v1097
        %v1129 = vmul.f32 %v1039, %v1097
        %v1130 = vmul.f32 %v1042, %v1097
        %v1131 = vmul.f32 %v1123, %v1098
        %v1132 = vmul.f32 %v1124, %v1098
        %v1133 = vmul.f32 %v1125, %v1098
        %v1134 = vmul.f32 %v1126, %v1098
        %v1135 = vadd.f32 %v1127, %v1131
        %v1136 = vadd.f32 %v1128, %v1132
        %v1137 = vadd.f32 %v1129, %v1133
        %v1138 = vadd.f32 %v1130, %v1134
        %vm1139 = vcmask 64512
        %v1141 = vsel %vm1139, %v1093, 0
        %v1144 = vsel %vm1139, %v1135, 0
        %1146 = vmatprep.subr.mxu0 0.0
        %1147 = vmatpush1.xpose.msra.mxu0 %v1144
        %1148 = vmatprep.subr.mxu0 0.0
        %1149 = vmatpush1.xpose.msra.mxu0 0.0
        %1150 = vmatprep.subr.mxu0 0.0
        %1151 = vmatpush1.xpose.msra.mxu0 0.0
        %1152 = vmatprep.subr.mxu0 0.0
        %1153 = vmatpush1.xpose.msra.mxu0 0.0
        %1154 = vmatprep.subr.mxu0 0.0
        %1155 = vmatpush1.xpose.msra.mxu0 0.0
        %1156 = vmatprep.subr.mxu0 0.0
        %1157 = vmatpush1.xpose.msra.mxu0 0.0
        %1158 = vmatprep.subr.mxu0 0.0
        %1159 = vmatpush1.xpose.msra.mxu0 0.0
        %1160 = vmatprep.subr.mxu0 0.0
        %1161 = vmatpush1.xpose.msra.mxu0 0.0
        %1162 = vmatprep.subr.mxu0 0.0
        %1163 = vmatpush1.xpose.msra.mxu0 0.0
        %1164 = vmatprep.subr.mxu0 0.0
        %1165 = vmatpush1.xpose.msra.mxu0 0.0
        %1166 = vmatprep.subr.mxu0 0.0
        %1167 = vmatpush1.xpose.msra.mxu0 0.0
        %1168 = vmatprep.subr.mxu0 0.0
        %1169 = vmatpush1.xpose.msra.mxu0 0.0
        %1170 = vmatprep.subr.mxu0 0.0
        %1171 = vmatpush1.xpose.msra.mxu0 0.0
        %1172 = vmatprep.subr.mxu0 0.0
        %1173 = vmatpush1.xpose.msra.mxu0 0.0
        %1174 = vmatprep.subr.mxu0 0.0
        %1175 = vmatpush1.xpose.msra.mxu0 0.0
        %1176 = vmatprep.subr.mxu0 0.0
        %1177 = vmatpush1.xpose.msra.mxu0 0.0
        %1178 = vmatprep.subr.mxu0 0.0
        %1179 = vmatpush1.xpose.msra.mxu0 0.0
        %1180 = vmatprep.subr.mxu0 0.0
        %1181 = vmatpush1.xpose.msra.mxu0 0.0
        %1182 = vmatprep.subr.mxu0 0.0
        %1183 = vmatpush1.xpose.msra.mxu0 0.0
        %1184 = vmatprep.subr.mxu0 0.0
        %1185 = vmatpush1.xpose.msra.mxu0 0.0
        %1186 = vmatprep.subr.mxu0 0.0
        %1187 = vmatpush1.xpose.msra.mxu0 0.0
        %1188 = vmatprep.subr.mxu0 0.0
        %1189 = vmatpush1.xpose.msra.mxu0 0.0
        %1190 = vmatprep.subr.mxu0 0.0
        %1191 = vmatpush1.xpose.msra.mxu0 0.0
        %1192 = vmatprep.subr.mxu0 0.0
        %1193 = vmatpush1.xpose.msra.mxu0 0.0
        %1194 = vmatprep.subr.mxu0 0.0
        %1195 = vmatpush1.xpose.msra.mxu0 0.0
        %1196 = vmatprep.subr.mxu0 0.0
        %1197 = vmatpush1.xpose.msra.mxu0 0.0
        %1198 = vmatprep.subr.mxu0 0.0
        %1199 = vmatpush1.xpose.msra.mxu0 0.0
        %1200 = vmatprep.subr.mxu0 0.0
        %1201 = vmatpush1.xpose.msra.mxu0 0.0
        %1202 = vmatprep.subr.mxu0 0.0
        %1203 = vmatpush1.xpose.msra.mxu0 0.0
        %1204 = vmatprep.subr.mxu0 0.0
        %1205 = vmatpush1.xpose.msra.mxu0 0.0
        %1206 = vmatprep.subr.mxu0 0.0
        %1207 = vmatpush1.xpose.msra.mxu0 0.0
        %1208 = vmatprep.subr.mxu0 0.0
        %1209 = vmatpush1.xpose.msra.mxu0 0.0
        %1210 = vmatprep.mubr.f32.mxu0 0.0
        %1211 = vmatmul.mubr.f32.gmra.mrb[0].mxu0 %v1141
        %v1212 = vpop.f32.mrb[0].mxu0
        %v1213 = vadd.f32 0.0, %v1212
        %v1214 = vpop.f32.mrb[0].mxu0
        %1215 = vdwg.mxu0
        %v1217 = vsel %vm1139, %v1094, 0
        %v1220 = vsel %vm1139, %v1136, 0
        %1222 = vmatprep.subr.mxu0 0.0
        %1223 = vmatpush1.xpose.msra.mxu0 %v1220
        %1224 = vmatprep.subr.mxu0 0.0
        %1225 = vmatpush1.xpose.msra.mxu0 0.0
        %1226 = vmatprep.subr.mxu0 0.0
        %1227 = vmatpush1.xpose.msra.mxu0 0.0
        %1228 = vmatprep.subr.mxu0 0.0
        %1229 = vmatpush1.xpose.msra.mxu0 0.0
        %1230 = vmatprep.subr.mxu0 0.0
        %1231 = vmatpush1.xpose.msra.mxu0 0.0
        %1232 = vmatprep.subr.mxu0 0.0
        %1233 = vmatpush1.xpose.msra.mxu0 0.0
        %1234 = vmatprep.subr.mxu0 0.0
        %1235 = vmatpush1.xpose.msra.mxu0 0.0
        %1236 = vmatprep.subr.mxu0 0.0
        %1237 = vmatpush1.xpose.msra.mxu0 0.0
        %1238 = vmatprep.subr.mxu0 0.0
        %1239 = vmatpush1.xpose.msra.mxu0 0.0
        %1240 = vmatprep.subr.mxu0 0.0
        %1241 = vmatpush1.xpose.msra.mxu0 0.0
        %1242 = vmatprep.subr.mxu0 0.0
        %1243 = vmatpush1.xpose.msra.mxu0 0.0
        %1244 = vmatprep.subr.mxu0 0.0
        %1245 = vmatpush1.xpose.msra.mxu0 0.0
        %1246 = vmatprep.subr.mxu0 0.0
        %1247 = vmatpush1.xpose.msra.mxu0 0.0
        %1248 = vmatprep.subr.mxu0 0.0
        %1249 = vmatpush1.xpose.msra.mxu0 0.0
        %1250 = vmatprep.subr.mxu0 0.0
        %1251 = vmatpush1.xpose.msra.mxu0 0.0
        %1252 = vmatprep.subr.mxu0 0.0
        %1253 = vmatpush1.xpose.msra.mxu0 0.0
        %1254 = vmatprep.subr.mxu0 0.0
        %1255 = vmatpush1.xpose.msra.mxu0 0.0
        %1256 = vmatprep.subr.mxu0 0.0
        %1257 = vmatpush1.xpose.msra.mxu0 0.0
        %1258 = vmatprep.subr.mxu0 0.0
        %1259 = vmatpush1.xpose.msra.mxu0 0.0
        %1260 = vmatprep.subr.mxu0 0.0
        %1261 = vmatpush1.xpose.msra.mxu0 0.0
        %1262 = vmatprep.subr.mxu0 0.0
        %1263 = vmatpush1.xpose.msra.mxu0 0.0
        %1264 = vmatprep.subr.mxu0 0.0
        %1265 = vmatpush1.xpose.msra.mxu0 0.0
        %1266 = vmatprep.subr.mxu0 0.0
        %1267 = vmatpush1.xpose.msra.mxu0 0.0
        %1268 = vmatprep.subr.mxu0 0.0
        %1269 = vmatpush1.xpose.msra.mxu0 0.0
        %1270 = vmatprep.subr.mxu0 0.0
        %1271 = vmatpush1.xpose.msra.mxu0 0.0
        %1272 = vmatprep.subr.mxu0 0.0
        %1273 = vmatpush1.xpose.msra.mxu0 0.0
        %1274 = vmatprep.subr.mxu0 0.0
        %1275 = vmatpush1.xpose.msra.mxu0 0.0
        %1276 = vmatprep.subr.mxu0 0.0
        %1277 = vmatpush1.xpose.msra.mxu0 0.0
        %1278 = vmatprep.subr.mxu0 0.0
        %1279 = vmatpush1.xpose.msra.mxu0 0.0
        %1280 = vmatprep.subr.mxu0 0.0
        %1281 = vmatpush1.xpose.msra.mxu0 0.0
        %1282 = vmatprep.subr.mxu0 0.0
        %1283 = vmatpush1.xpose.msra.mxu0 0.0
        %1284 = vmatprep.subr.mxu0 0.0
        %1285 = vmatpush1.xpose.msra.mxu0 0.0
        %1286 = vmatprep.mubr.f32.mxu0 0.0
        %1287 = vmatmul.mubr.f32.gmra.mrb[0].mxu0 %v1217
        %v1288 = vpop.f32.mrb[0].mxu0
        %v1289 = vadd.f32 0.0, %v1288
        %v1290 = vpop.f32.mrb[0].mxu0
        %1291 = vdwg.mxu0
        %v1293 = vsel %vm1139, %v1095, 0
        %v1296 = vsel %vm1139, %v1137, 0
        %1298 = vmatprep.subr.mxu0 0.0
        %1299 = vmatpush1.xpose.msra.mxu0 %v1296
        %1300 = vmatprep.subr.mxu0 0.0
        %1301 = vmatpush1.xpose.msra.mxu0 0.0
        %1302 = vmatprep.subr.mxu0 0.0
        %1303 = vmatpush1.xpose.msra.mxu0 0.0
        %1304 = vmatprep.subr.mxu0 0.0
        %1305 = vmatpush1.xpose.msra.mxu0 0.0
        %1306 = vmatprep.subr.mxu0 0.0
        %1307 = vmatpush1.xpose.msra.mxu0 0.0
        %1308 = vmatprep.subr.mxu0 0.0
        %1309 = vmatpush1.xpose.msra.mxu0 0.0
        %1310 = vmatprep.subr.mxu0 0.0
        %1311 = vmatpush1.xpose.msra.mxu0 0.0
        %1312 = vmatprep.subr.mxu0 0.0
        %1313 = vmatpush1.xpose.msra.mxu0 0.0
        %1314 = vmatprep.subr.mxu0 0.0
        %1315 = vmatpush1.xpose.msra.mxu0 0.0
        %1316 = vmatprep.subr.mxu0 0.0
        %1317 = vmatpush1.xpose.msra.mxu0 0.0
        %1318 = vmatprep.subr.mxu0 0.0
        %1319 = vmatpush1.xpose.msra.mxu0 0.0
        %1320 = vmatprep.subr.mxu0 0.0
        %1321 = vmatpush1.xpose.msra.mxu0 0.0
        %1322 = vmatprep.subr.mxu0 0.0
        %1323 = vmatpush1.xpose.msra.mxu0 0.0
        %1324 = vmatprep.subr.mxu0 0.0
        %1325 = vmatpush1.xpose.msra.mxu0 0.0
        %1326 = vmatprep.subr.mxu0 0.0
        %1327 = vmatpush1.xpose.msra.mxu0 0.0
        %1328 = vmatprep.subr.mxu0 0.0
        %1329 = vmatpush1.xpose.msra.mxu0 0.0
        %1330 = vmatprep.subr.mxu0 0.0
        %1331 = vmatpush1.xpose.msra.mxu0 0.0
        %1332 = vmatprep.subr.mxu0 0.0
        %1333 = vmatpush1.xpose.msra.mxu0 0.0
        %1334 = vmatprep.subr.mxu0 0.0
        %1335 = vmatpush1.xpose.msra.mxu0 0.0
        %1336 = vmatprep.subr.mxu0 0.0
        %1337 = vmatpush1.xpose.msra.mxu0 0.0
        %1338 = vmatprep.subr.mxu0 0.0
        %1339 = vmatpush1.xpose.msra.mxu0 0.0
        %1340 = vmatprep.subr.mxu0 0.0
        %1341 = vmatpush1.xpose.msra.mxu0 0.0
        %1342 = vmatprep.subr.mxu0 0.0
        %1343 = vmatpush1.xpose.msra.mxu0 0.0
        %1344 = vmatprep.subr.mxu0 0.0
        %1345 = vmatpush1.xpose.msra.mxu0 0.0
        %1346 = vmatprep.subr.mxu0 0.0
        %1347 = vmatpush1.xpose.msra.mxu0 0.0
        %1348 = vmatprep.subr.mxu0 0.0
        %1349 = vmatpush1.xpose.msra.mxu0 0.0
        %1350 = vmatprep.subr.mxu0 0.0
        %1351 = vmatpush1.xpose.msra.mxu0 0.0
        %1352 = vmatprep.subr.mxu0 0.0
        %1353 = vmatpush1.xpose.msra.mxu0 0.0
        %1354 = vmatprep.subr.mxu0 0.0
        %1355 = vmatpush1.xpose.msra.mxu0 0.0
        %1356 = vmatprep.subr.mxu0 0.0
        %1357 = vmatpush1.xpose.msra.mxu0 0.0
        %1358 = vmatprep.subr.mxu0 0.0
        %1359 = vmatpush1.xpose.msra.mxu0 0.0
        %1360 = vmatprep.subr.mxu0 0.0
        %1361 = vmatpush1.xpose.msra.mxu0 0.0
        %1362 = vmatprep.mubr.f32.mxu0 0.0
        %1363 = vmatmul.mubr.f32.gmra.mrb[0].mxu0 %v1293
        %v1364 = vpop.f32.mrb[0].mxu0
        %v1365 = vadd.f32 0.0, %v1364
        %v1366 = vpop.f32.mrb[0].mxu0
        %1367 = vdwg.mxu0
        %v1369 = vsel %vm1139, %v1096, 0
        %v1372 = vsel %vm1139, %v1138, 0
        %1374 = vmatprep.subr.mxu0 0.0
        %1375 = vmatpush1.xpose.msra.mxu0 %v1372
        %1376 = vmatprep.subr.mxu0 0.0
        %1377 = vmatpush1.xpose.msra.mxu0 0.0
        %1378 = vmatprep.subr.mxu0 0.0
        %1379 = vmatpush1.xpose.msra.mxu0 0.0
        %1380 = vmatprep.subr.mxu0 0.0
        %1381 = vmatpush1.xpose.msra.mxu0 0.0
        %1382 = vmatprep.subr.mxu0 0.0
        %1383 = vmatpush1.xpose.msra.mxu0 0.0
        %1384 = vmatprep.subr.mxu0 0.0
        %1385 = vmatpush1.xpose.msra.mxu0 0.0
        %1386 = vmatprep.subr.mxu0 0.0
        %1387 = vmatpush1.xpose.msra.mxu0 0.0
        %1388 = vmatprep.subr.mxu0 0.0
        %1389 = vmatpush1.xpose.msra.mxu0 0.0
        %1390 = vmatprep.subr.mxu0 0.0
        %1391 = vmatpush1.xpose.msra.mxu0 0.0
        %1392 = vmatprep.subr.mxu0 0.0
        %1393 = vmatpush1.xpose.msra.mxu0 0.0
        %1394 = vmatprep.subr.mxu0 0.0
        %1395 = vmatpush1.xpose.msra.mxu0 0.0
        %1396 = vmatprep.subr.mxu0 0.0
        %1397 = vmatpush1.xpose.msra.mxu0 0.0
        %1398 = vmatprep.subr.mxu0 0.0
        %1399 = vmatpush1.xpose.msra.mxu0 0.0
        %1400 = vmatprep.subr.mxu0 0.0
        %1401 = vmatpush1.xpose.msra.mxu0 0.0
        %1402 = vmatprep.subr.mxu0 0.0
        %1403 = vmatpush1.xpose.msra.mxu0 0.0
        %1404 = vmatprep.subr.mxu0 0.0
        %1405 = vmatpush1.xpose.msra.mxu0 0.0
        %1406 = vmatprep.subr.mxu0 0.0
        %1407 = vmatpush1.xpose.msra.mxu0 0.0
        %1408 = vmatprep.subr.mxu0 0.0
        %1409 = vmatpush1.xpose.msra.mxu0 0.0
        %1410 = vmatprep.subr.mxu0 0.0
        %1411 = vmatpush1.xpose.msra.mxu0 0.0
        %1412 = vmatprep.subr.mxu0 0.0
        %1413 = vmatpush1.xpose.msra.mxu0 0.0
        %1414 = vmatprep.subr.mxu0 0.0
        %1415 = vmatpush1.xpose.msra.mxu0 0.0
        %1416 = vmatprep.subr.mxu0 0.0
        %1417 = vmatpush1.xpose.msra.mxu0 0.0
        %1418 = vmatprep.subr.mxu0 0.0
        %1419 = vmatpush1.xpose.msra.mxu0 0.0
        %1420 = vmatprep.subr.mxu0 0.0
        %1421 = vmatpush1.xpose.msra.mxu0 0.0
        %1422 = vmatprep.subr.mxu0 0.0
        %1423 = vmatpush1.xpose.msra.mxu0 0.0
        %1424 = vmatprep.subr.mxu0 0.0
        %1425 = vmatpush1.xpose.msra.mxu0 0.0
        %1426 = vmatprep.subr.mxu0 0.0
        %1427 = vmatpush1.xpose.msra.mxu0 0.0
        %1428 = vmatprep.subr.mxu0 0.0
        %1429 = vmatpush1.xpose.msra.mxu0 0.0
        %1430 = vmatprep.subr.mxu0 0.0
        %1431 = vmatpush1.xpose.msra.mxu0 0.0
        %1432 = vmatprep.subr.mxu0 0.0
        %1433 = vmatpush1.xpose.msra.mxu0 0.0
        %1434 = vmatprep.subr.mxu0 0.0
        %1435 = vmatpush1.xpose.msra.mxu0 0.0
        %1436 = vmatprep.subr.mxu0 0.0
        %1437 = vmatpush1.xpose.msra.mxu0 0.0
        %1438 = vmatprep.mubr.f32.mxu0 0.0
        %1439 = vmatmul.mubr.f32.gmra.mrb[0].mxu0 %v1369
        %v1440 = vpop.f32.mrb[0].mxu0
        %v1441 = vadd.f32 0.0, %v1440
        %v1442 = vpop.f32.mrb[0].mxu0
        %1443 = vdwg.mxu0
        %v1444 = vsel %vm1139, %v1213, -inf
        %1445 = vmax.xlane.f32.xlu0 %v1444
        %v1446 = vpop.xlane.xlu0 %1445
        %v1447 = vsel %vm1139, %v1289, -inf
        %1448 = vmax.xlane.f32.xlu0 %v1447
        %v1449 = vpop.xlane.xlu0 %1448
        %v1450 = vsel %vm1139, %v1365, -inf
        %1451 = vmax.xlane.f32.xlu0 %v1450
        %v1452 = vpop.xlane.xlu0 %1451
        %v1453 = vsel %vm1139, %v1441, -inf
        %1454 = vmax.xlane.f32.xlu0 %v1453
        %v1455 = vpop.xlane.xlu0 %1454
        %v1456 = vsub.f32 %v1213, %v1446
        %v1457 = vsub.f32 %v1289, %v1449
        %v1458 = vsub.f32 %v1365, %v1452
        %v1459 = vsub.f32 %v1441, %v1455
        %v1460 = vmul.f32 %v1456, 1.442695
        %v1461 = vpow.pop %v1460
        %v1462 = vmul.f32 %v1457, 1.442695
        %v1463 = vpow.pop %v1462
        %v1464 = vmul.f32 %v1458, 1.442695
        %v1465 = vpow.pop %v1464
        %v1466 = vmul.f32 %v1459, 1.442695
        %v1467 = vpow.pop %v1466
        %v1468 = vsel %vm1139, %v1461, 0.0
        %1469 = vadd.xlane.f32.xlu0 %v1468
        %v1470 = vpop.xlane.xlu0 %1469
        %v1471 = vsel %vm1139, %v1463, 0.0
        %1472 = vadd.xlane.f32.xlu0 %v1471
        %v1473 = vpop.xlane.xlu0 %1472
        %v1474 = vsel %vm1139, %v1465, 0.0
        %1475 = vadd.xlane.f32.xlu0 %v1474
        %v1476 = vpop.xlane.xlu0 %1475
        %v1477 = vsel %vm1139, %v1467, 0.0
        %1478 = vadd.xlane.f32.xlu0 %v1477
        %v1479 = vpop.xlane.xlu0 %1478
        %v1480 = vrcp.pop %v1470
        %v1481 = vrcp.pop %v1473
        %v1482 = vrcp.pop %v1476
        %v1483 = vrcp.pop %v1479
        %v1484 = vmul.f32 %v1461, %v1480
        %v1485 = vmul.f32 %v1463, %v1481
        %v1486 = vmul.f32 %v1465, %v1482
        %v1487 = vmul.f32 %v1467, %v1483
        %1488 = vst.msk [vmem:[%s763] sm:$0xff] %vm1139, %v1484
        %1489 = vst.msk [vmem:[%s763 + $0x8] sm:$0xff] %vm1139, %v1485
        %1490 = vst.msk [vmem:[%s763 + $0x10] sm:$0xff] %vm1139, %v1486
        %1491 = vst.msk [vmem:[%s763 + $0x18] sm:$0xff] %vm1139, %v1487
        %v1493 = vsel %vm1139, %v1484, 0
        %1495 = vmatprep.subr.mxu0 0.0
        %1496 = vmatpush1.msra.mxu0 %v1021
        %1497 = vmatprep.subr.mxu0 0.0
        %1498 = vmatpush1.msra.mxu0 0.0
        %1499 = vmatprep.subr.mxu0 0.0
        %1500 = vmatpush1.msra.mxu0 0.0
        %1501 = vmatprep.subr.mxu0 0.0
        %1502 = vmatpush1.msra.mxu0 0.0
        %1503 = vmatprep.subr.mxu0 0.0
        %1504 = vmatpush1.msra.mxu0 0.0
        %1505 = vmatprep.subr.mxu0 0.0
        %1506 = vmatpush1.msra.mxu0 0.0
        %1507 = vmatprep.subr.mxu0 0.0
        %1508 = vmatpush1.msra.mxu0 0.0
        %1509 = vmatprep.subr.mxu0 0.0
        %1510 = vmatpush1.msra.mxu0 0.0
        %1511 = vmatprep.subr.mxu0 0.0
        %1512 = vmatpush1.msra.mxu0 0.0
        %1513 = vmatprep.subr.mxu0 0.0
        %1514 = vmatpush1.msra.mxu0 0.0
        %1515 = vmatprep.subr.mxu0 0.0
        %1516 = vmatpush1.msra.mxu0 0.0
        %1517 = vmatprep.subr.mxu0 0.0
        %1518 = vmatpush1.msra.mxu0 0.0
        %1519 = vmatprep.subr.mxu0 0.0
        %1520 = vmatpush1.msra.mxu0 0.0
        %1521 = vmatprep.subr.mxu0 0.0
        %1522 = vmatpush1.msra.mxu0 0.0
        %1523 = vmatprep.subr.mxu0 0.0
        %1524 = vmatpush1.msra.mxu0 0.0
        %1525 = vmatprep.subr.mxu0 0.0
        %1526 = vmatpush1.msra.mxu0 0.0
        %1527 = vmatprep.subr.mxu0 0.0
        %1528 = vmatpush1.msra.mxu0 0.0
        %1529 = vmatprep.subr.mxu0 0.0
        %1530 = vmatpush1.msra.mxu0 0.0
        %1531 = vmatprep.subr.mxu0 0.0
        %1532 = vmatpush1.msra.mxu0 0.0
        %1533 = vmatprep.subr.mxu0 0.0
        %1534 = vmatpush1.msra.mxu0 0.0
        %1535 = vmatprep.subr.mxu0 0.0
        %1536 = vmatpush1.msra.mxu0 0.0
        %1537 = vmatprep.subr.mxu0 0.0
        %1538 = vmatpush1.msra.mxu0 0.0
        %1539 = vmatprep.subr.mxu0 0.0
        %1540 = vmatpush1.msra.mxu0 0.0
        %1541 = vmatprep.subr.mxu0 0.0
        %1542 = vmatpush1.msra.mxu0 0.0
        %1543 = vmatprep.subr.mxu0 0.0
        %1544 = vmatpush1.msra.mxu0 0.0
        %1545 = vmatprep.subr.mxu0 0.0
        %1546 = vmatpush1.msra.mxu0 0.0
        %1547 = vmatprep.subr.mxu0 0.0
        %1548 = vmatpush1.msra.mxu0 0.0
        %1549 = vmatprep.subr.mxu0 0.0
        %1550 = vmatpush1.msra.mxu0 0.0
        %1551 = vmatprep.subr.mxu0 0.0
        %1552 = vmatpush1.msra.mxu0 0.0
        %1553 = vmatprep.subr.mxu0 0.0
        %1554 = vmatpush1.msra.mxu0 0.0
        %1555 = vmatprep.subr.mxu0 0.0
        %1556 = vmatpush1.msra.mxu0 0.0
        %1557 = vmatprep.subr.mxu0 0.0
        %1558 = vmatpush1.msra.mxu0 0.0
        %1559 = vmatprep.mubr.f32.mxu0 0.0
        %1560 = vmatmul.mubr.f32.gmra.mrb[0].mxu0 %v1493
        %v1561 = vpop.f32.mrb[0].mxu0
        %v1562 = vadd.f32 0.0, %v1561
        %v1563 = vpop.f32.mrb[0].mxu0
        %1564 = vdwg.mxu0
        %v1566 = vsel %vm1139, %v1485, 0
        %1568 = vmatprep.subr.mxu0 0.0
        %1569 = vmatpush1.msra.mxu0 %v1046
        %1570 = vmatprep.subr.mxu0 0.0
        %1571 = vmatpush1.msra.mxu0 0.0
        %1572 = vmatprep.subr.mxu0 0.0
        %1573 = vmatpush1.msra.mxu0 0.0
        %1574 = vmatprep.subr.mxu0 0.0
        %1575 = vmatpush1.msra.mxu0 0.0
        %1576 = vmatprep.subr.mxu0 0.0
        %1577 = vmatpush1.msra.mxu0 0.0
        %1578 = vmatprep.subr.mxu0 0.0
        %1579 = vmatpush1.msra.mxu0 0.0
        %1580 = vmatprep.subr.mxu0 0.0
        %1581 = vmatpush1.msra.mxu0 0.0
        %1582 = vmatprep.subr.mxu0 0.0
        %1583 = vmatpush1.msra.mxu0 0.0
        %1584 = vmatprep.subr.mxu0 0.0
        %1585 = vmatpush1.msra.mxu0 0.0
        %1586 = vmatprep.subr.mxu0 0.0
        %1587 = vmatpush1.msra.mxu0 0.0
        %1588 = vmatprep.subr.mxu0 0.0
        %1589 = vmatpush1.msra.mxu0 0.0
        %1590 = vmatprep.subr.mxu0 0.0
        %1591 = vmatpush1.msra.mxu0 0.0
        %1592 = vmatprep.subr.mxu0 0.0
        %1593 = vmatpush1.msra.mxu0 0.0
        %1594 = vmatprep.subr.mxu0 0.0
        %1595 = vmatpush1.msra.mxu0 0.0
        %1596 = vmatprep.subr.mxu0 0.0
        %1597 = vmatpush1.msra.mxu0 0.0
        %1598 = vmatprep.subr.mxu0 0.0
        %1599 = vmatpush1.msra.mxu0 0.0
        %1600 = vmatprep.subr.mxu0 0.0
        %1601 = vmatpush1.msra.mxu0 0.0
        %1602 = vmatprep.subr.mxu0 0.0
        %1603 = vmatpush1.msra.mxu0 0.0
        %1604 = vmatprep.subr.mxu0 0.0
        %1605 = vmatpush1.msra.mxu0 0.0
        %1606 = vmatprep.subr.mxu0 0.0
        %1607 = vmatpush1.msra.mxu0 0.0
        %1608 = vmatprep.subr.mxu0 0.0
        %1609 = vmatpush1.msra.mxu0 0.0
        %1610 = vmatprep.subr.mxu0 0.0
        %1611 = vmatpush1.msra.mxu0 0.0
        %1612 = vmatprep.subr.mxu0 0.0
        %1613 = vmatpush1.msra.mxu0 0.0
        %1614 = vmatprep.subr.mxu0 0.0
        %1615 = vmatpush1.msra.mxu0 0.0
        %1616 = vmatprep.subr.mxu0 0.0
        %1617 = vmatpush1.msra.mxu0 0.0
        %1618 = vmatprep.subr.mxu0 0.0
        %1619 = vmatpush1.msra.mxu0 0.0
        %1620 = vmatprep.subr.mxu0 0.0
        %1621 = vmatpush1.msra.mxu0 0.0
        %1622 = vmatprep.subr.mxu0 0.0
        %1623 = vmatpush1.msra.mxu0 0.0
        %1624 = vmatprep.subr.mxu0 0.0
        %1625 = vmatpush1.msra.mxu0 0.0
        %1626 = vmatprep.subr.mxu0 0.0
        %1627 = vmatpush1.msra.mxu0 0.0
        %1628 = vmatprep.subr.mxu0 0.0
        %1629 = vmatpush1.msra.mxu0 0.0
        %1630 = vmatprep.subr.mxu0 0.0
        %1631 = vmatpush1.msra.mxu0 0.0
        %1632 = vmatprep.mubr.f32.mxu0 0.0
        %1633 = vmatmul.mubr.f32.gmra.mrb[0].mxu0 %v1566
        %v1634 = vpop.f32.mrb[0].mxu0
        %v1635 = vadd.f32 0.0, %v1634
        %v1636 = vpop.f32.mrb[0].mxu0
        %1637 = vdwg.mxu0
        %v1639 = vsel %vm1139, %v1486, 0
        %1641 = vmatprep.subr.mxu0 0.0
        %1642 = vmatpush1.msra.mxu0 %v1049
        %1643 = vmatprep.subr.mxu0 0.0
        %1644 = vmatpush1.msra.mxu0 0.0
        %1645 = vmatprep.subr.mxu0 0.0
        %1646 = vmatpush1.msra.mxu0 0.0
        %1647 = vmatprep.subr.mxu0 0.0
        %1648 = vmatpush1.msra.mxu0 0.0
        %1649 = vmatprep.subr.mxu0 0.0
        %1650 = vmatpush1.msra.mxu0 0.0
        %1651 = vmatprep.subr.mxu0 0.0
        %1652 = vmatpush1.msra.mxu0 0.0
        %1653 = vmatprep.subr.mxu0 0.0
        %1654 = vmatpush1.msra.mxu0 0.0
        %1655 = vmatprep.subr.mxu0 0.0
        %1656 = vmatpush1.msra.mxu0 0.0
        %1657 = vmatprep.subr.mxu0 0.0
        %1658 = vmatpush1.msra.mxu0 0.0
        %1659 = vmatprep.subr.mxu0 0.0
        %1660 = vmatpush1.msra.mxu0 0.0
        %1661 = vmatprep.subr.mxu0 0.0
        %1662 = vmatpush1.msra.mxu0 0.0
        %1663 = vmatprep.subr.mxu0 0.0
        %1664 = vmatpush1.msra.mxu0 0.0
        %1665 = vmatprep.subr.mxu0 0.0
        %1666 = vmatpush1.msra.mxu0 0.0
        %1667 = vmatprep.subr.mxu0 0.0
        %1668 = vmatpush1.msra.mxu0 0.0
        %1669 = vmatprep.subr.mxu0 0.0
        %1670 = vmatpush1.msra.mxu0 0.0
        %1671 = vmatprep.subr.mxu0 0.0
        %1672 = vmatpush1.msra.mxu0 0.0
        %1673 = vmatprep.subr.mxu0 0.0
        %1674 = vmatpush1.msra.mxu0 0.0
        %1675 = vmatprep.subr.mxu0 0.0
        %1676 = vmatpush1.msra.mxu0 0.0
        %1677 = vmatprep.subr.mxu0 0.0
        %1678 = vmatpush1.msra.mxu0 0.0
        %1679 = vmatprep.subr.mxu0 0.0
        %1680 = vmatpush1.msra.mxu0 0.0
        %1681 = vmatprep.subr.mxu0 0.0
        %1682 = vmatpush1.msra.mxu0 0.0
        %1683 = vmatprep.subr.mxu0 0.0
        %1684 = vmatpush1.msra.mxu0 0.0
        %1685 = vmatprep.subr.mxu0 0.0
        %1686 = vmatpush1.msra.mxu0 0.0
        %1687 = vmatprep.subr.mxu0 0.0
        %1688 = vmatpush1.msra.mxu0 0.0
        %1689 = vmatprep.subr.mxu0 0.0
        %1690 = vmatpush1.msra.mxu0 0.0
        %1691 = vmatprep.subr.mxu0 0.0
        %1692 = vmatpush1.msra.mxu0 0.0
        %1693 = vmatprep.subr.mxu0 0.0
        %1694 = vmatpush1.msra.mxu0 0.0
        %1695 = vmatprep.subr.mxu0 0.0
        %1696 = vmatpush1.msra.mxu0 0.0
        %1697 = vmatprep.subr.mxu0 0.0
        %1698 = vmatpush1.msra.mxu0 0.0
        %1699 = vmatprep.subr.mxu0 0.0
        %1700 = vmatpush1.msra.mxu0 0.0
        %1701 = vmatprep.subr.mxu0 0.0
        %1702 = vmatpush1.msra.mxu0 0.0
        %1703 = vmatprep.subr.mxu0 0.0
        %1704 = vmatpush1.msra.mxu0 0.0
        %1705 = vmatprep.mubr.f32.mxu0 0.0
        %1706 = vmatmul.mubr.f32.gmra.mrb[0].mxu0 %v1639
        %v1707 = vpop.f32.mrb[0].mxu0
        %v1708 = vadd.f32 0.0, %v1707
        %v1709 = vpop.f32.mrb[0].mxu0
        %1710 = vdwg.mxu0
        %v1712 = vsel %vm1139, %v1487, 0
        %1714 = vmatprep.subr.mxu0 0.0
        %1715 = vmatpush1.msra.mxu0 %v1052
        %1716 = vmatprep.subr.mxu0 0.0
        %1717 = vmatpush1.msra.mxu0 0.0
        %1718 = vmatprep.subr.mxu0 0.0
        %1719 = vmatpush1.msra.mxu0 0.0
        %1720 = vmatprep.subr.mxu0 0.0
        %1721 = vmatpush1.msra.mxu0 0.0
        %1722 = vmatprep.subr.mxu0 0.0
        %1723 = vmatpush1.msra.mxu0 0.0
        %1724 = vmatprep.subr.mxu0 0.0
        %1725 = vmatpush1.msra.mxu0 0.0
        %1726 = vmatprep.subr.mxu0 0.0
        %1727 = vmatpush1.msra.mxu0 0.0
        %1728 = vmatprep.subr.mxu0 0.0
        %1729 = vmatpush1.msra.mxu0 0.0
        %1730 = vmatprep.subr.mxu0 0.0
        %1731 = vmatpush1.msra.mxu0 0.0
        %1732 = vmatprep.subr.mxu0 0.0
        %1733 = vmatpush1.msra.mxu0 0.0
        %1734 = vmatprep.subr.mxu0 0.0
        %1735 = vmatpush1.msra.mxu0 0.0
        %1736 = vmatprep.subr.mxu0 0.0
        %1737 = vmatpush1.msra.mxu0 0.0
        %1738 = vmatprep.subr.mxu0 0.0
        %1739 = vmatpush1.msra.mxu0 0.0
        %1740 = vmatprep.subr.mxu0 0.0
        %1741 = vmatpush1.msra.mxu0 0.0
        %1742 = vmatprep.subr.mxu0 0.0
        %1743 = vmatpush1.msra.mxu0 0.0
        %1744 = vmatprep.subr.mxu0 0.0
        %1745 = vmatpush1.msra.mxu0 0.0
        %1746 = vmatprep.subr.mxu0 0.0
        %1747 = vmatpush1.msra.mxu0 0.0
        %1748 = vmatprep.subr.mxu0 0.0
        %1749 = vmatpush1.msra.mxu0 0.0
        %1750 = vmatprep.subr.mxu0 0.0
        %1751 = vmatpush1.msra.mxu0 0.0
        %1752 = vmatprep.subr.mxu0 0.0
        %1753 = vmatpush1.msra.mxu0 0.0
        %1754 = vmatprep.subr.mxu0 0.0
        %1755 = vmatpush1.msra.mxu0 0.0
        %1756 = vmatprep.subr.mxu0 0.0
        %1757 = vmatpush1.msra.mxu0 0.0
        %1758 = vmatprep.subr.mxu0 0.0
        %1759 = vmatpush1.msra.mxu0 0.0
        %1760 = vmatprep.subr.mxu0 0.0
        %1761 = vmatpush1.msra.mxu0 0.0
        %1762 = vmatprep.subr.mxu0 0.0
        %1763 = vmatpush1.msra.mxu0 0.0
        %1764 = vmatprep.subr.mxu0 0.0
        %1765 = vmatpush1.msra.mxu0 0.0
        %1766 = vmatprep.subr.mxu0 0.0
        %1767 = vmatpush1.msra.mxu0 0.0
        %1768 = vmatprep.subr.mxu0 0.0
        %1769 = vmatpush1.msra.mxu0 0.0
        %1770 = vmatprep.subr.mxu0 0.0
        %1771 = vmatpush1.msra.mxu0 0.0
        %1772 = vmatprep.subr.mxu0 0.0
        %1773 = vmatpush1.msra.mxu0 0.0
        %1774 = vmatprep.subr.mxu0 0.0
        %1775 = vmatpush1.msra.mxu0 0.0
        %1776 = vmatprep.subr.mxu0 0.0
        %1777 = vmatpush1.msra.mxu0 0.0
        %1778 = vmatprep.mubr.f32.mxu0 0.0
        %1779 = vmatmul.mubr.f32.gmra.mrb[0].mxu0 %v1712
        %v1780 = vpop.f32.mrb[0].mxu0
        %v1781 = vadd.f32 0.0, %v1780
        %v1782 = vpop.f32.mrb[0].mxu0
        %1783 = vdwg.mxu0
        %1785 = vrot.lane.b32.xlu0 %v1635, 8
        %v1786 = vpop.permute.xlu0 %1785
        %1789 = vrot.lane.b32.xlu0 %v1708, 16
        %v1790 = vpop.permute.xlu0 %1789
        %1793 = vrot.lane.b32.xlu0 %v1781, 24
        %v1794 = vpop.permute.xlu0 %1793
        %v1796 = vsel %vm1139, %v1562, %v1786
        %vm1797 = vcmask 130048
        %v1798 = vsel %vm1797, %v1796, %v1790
        %vm1799 = vcmask 195584
        %v1800 = vsel %vm1799, %v1798, %v1794
        %v1801 = vld [vmem:[%s9] sm:$0xff]
        %v1802 = vld [vmem:[%s9 + $0x8] sm:$0xff]
        %v1803 = vld [vmem:[%s9 + $0x10] sm:$0xff]
        %v1804 = vld [vmem:[%s9 + $0x18] sm:$0xff]
        %v1805 = vld [vmem:[#allocation16] sm:$0x1]
        %v1807 = vlaneseq
        %v1808 = vshrl.u32 %v1807, 7
        %v1809 = vsub.s32 0, %v1808
        %v1810 = vrot.slane %v1805, %v1809
        %v1813 = vsel %vm782, %v1800, 0
        %1815 = vmatprep.subr.mxu0 0.0
        %1816 = vmatpush1.msra.mxu0 %v1801
        %1817 = vmatprep.subr.mxu0 0.0
        %1818 = vmatpush1.msra.mxu0 %v1802
        %1819 = vmatprep.subr.mxu0 0.0
        %1820 = vmatpush1.msra.mxu0 %v1803
        %1821 = vmatprep.subr.mxu0 0.0
        %1822 = vmatpush1.msra.mxu0 %v1804
        %1823 = vmatprep.subr.mxu0 0.0
        %1824 = vmatpush1.msra.mxu0 0.0
        %1825 = vmatprep.subr.mxu0 0.0
        %1826 = vmatpush1.msra.mxu0 0.0
        %1827 = vmatprep.subr.mxu0 0.0
        %1828 = vmatpush1.msra.mxu0 0.0
        %1829 = vmatprep.subr.mxu0 0.0
        %1830 = vmatpush1.msra.mxu0 0.0
        %1831 = vmatprep.subr.mxu0 0.0
        %1832 = vmatpush1.msra.mxu0 0.0
        %1833 = vmatprep.subr.mxu0 0.0
        %1834 = vmatpush1.msra.mxu0 0.0
        %1835 = vmatprep.subr.mxu0 0.0
        %1836 = vmatpush1.msra.mxu0 0.0
        %1837 = vmatprep.subr.mxu0 0.0
        %1838 = vmatpush1.msra.mxu0 0.0
        %1839 = vmatprep.subr.mxu0 0.0
        %1840 = vmatpush1.msra.mxu0 0.0
        %1841 = vmatprep.subr.mxu0 0.0
        %1842 = vmatpush1.msra.mxu0 0.0
        %1843 = vmatprep.subr.mxu0 0.0
        %1844 = vmatpush1.msra.mxu0 0.0
        %1845 = vmatprep.subr.mxu0 0.0
        %1846 = vmatpush1.msra.mxu0 0.0
        %1847 = vmatprep.subr.mxu0 0.0
        %1848 = vmatpush1.msra.mxu0 0.0
        %1849 = vmatprep.subr.mxu0 0.0
        %1850 = vmatpush1.msra.mxu0 0.0
        %1851 = vmatprep.subr.mxu0 0.0
        %1852 = vmatpush1.msra.mxu0 0.0
        %1853 = vmatprep.subr.mxu0 0.0
        %1854 = vmatpush1.msra.mxu0 0.0
        %1855 = vmatprep.subr.mxu0 0.0
        %1856 = vmatpush1.msra.mxu0 0.0
        %1857 = vmatprep.subr.mxu0 0.0
        %1858 = vmatpush1.msra.mxu0 0.0
        %1859 = vmatprep.subr.mxu0 0.0
        %1860 = vmatpush1.msra.mxu0 0.0
        %1861 = vmatprep.subr.mxu0 0.0
        %1862 = vmatpush1.msra.mxu0 0.0
        %1863 = vmatprep.subr.mxu0 0.0
        %1864 = vmatpush1.msra.mxu0 0.0
        %1865 = vmatprep.subr.mxu0 0.0
        %1866 = vmatpush1.msra.mxu0 0.0
        %1867 = vmatprep.subr.mxu0 0.0
        %1868 = vmatpush1.msra.mxu0 0.0
        %1869 = vmatprep.subr.mxu0 0.0
        %1870 = vmatpush1.msra.mxu0 0.0
        %1871 = vmatprep.subr.mxu0 0.0
        %1872 = vmatpush1.msra.mxu0 0.0
        %1873 = vmatprep.subr.mxu0 0.0
        %1874 = vmatpush1.msra.mxu0 0.0
        %1875 = vmatprep.subr.mxu0 0.0
        %1876 = vmatpush1.msra.mxu0 0.0
        %1877 = vmatprep.subr.mxu0 0.0
        %1878 = vmatpush1.msra.mxu0 0.0
        %1879 = vmatprep.mubr.f32.mxu0 0.0
        %1880 = vmatmul.mubr.f32.gmra.mrb[0].mxu0 %v1813
        %v1881 = vpop.f32.mrb[0].mxu0
        %v1882 = vadd.f32 %v1810, %v1881
        %v1883 = vpop.f32.mrb[0].mxu0
        %1884 = vdwg.mxu0
        %1885 = vst.msk [vmem:[%s756] sm:$0xff] %vm782, %v1882
        %s1886 = sand.u32 %s408, 1
        %s1887 = scalar_lea.sflag [#allocation4], %s1886
        %s1888 = sand.u32 %s408, 1
        %s1889 = smul.addr %s1888, 8
        %s1890 = scalar_lea.vmem [#allocation20], %s1889
        %s1891 = sand.u32 %s436, 1
        %s1892 = scalar_lea.sflag [#allocation22], %s1891
        %s1893 = sand.u32 %s436, 1
        %s1894 = smul.addr %s1893, 32
        %s1895 = scalar_lea.vmem [#allocation21], %s1894
        // Predicated region
        $region125: #{tpu_custom_call.1} parent=79 // pred_check
          %p1896 = pneg %p418
        $region126: #{tpu_custom_call.1} parent=79 // pred_check_branch
          %1898 = sbr.rel (%p1896) target = $region128
        $region127: #{tpu_custom_call.1} parent=79 // pred_region
          %s1900 = ssub.s32 128, 128
          %1901 = vsyncadd %s1887, %s1900
          %s1902 = sadd.s32 %s49, %s48
          %s1903 = smul.addr %s1902, 128
          %s1904 = scalar_lea.hbm %s15, %s1903
          %s1906 = sshll.u32 %s1890, 4
          %s1907 = int_to_ptr.vmem [resolvable:$true] %s1906
          %1909 = dma.vmem_to_hbm [thread:$0]  %s1907, 128, %s1904, %s1887
        $region128: #{tpu_custom_call.1} parent=79 // pred_fallthru
          _
        // Predicated region
        $region129: #{tpu_custom_call.1} parent=79 // pred_check
          %p1910 = pneg %p446
        $region130: #{tpu_custom_call.1} parent=79 // pred_check_branch
          %1912 = sbr.rel (%p1910) target = $region132
        $region131: #{tpu_custom_call.1} parent=79 // pred_region
          %s1914 = ssub.s32 512, 512
          %1915 = vsyncadd %s1892, %s1914
          %s1916 = smul.addr %s48, 4
          %s1917 = sadd.s32 %s49, %s1916
          %s1918 = smul.addr %s1917, 128
          %s1919 = scalar_lea.hbm %s16, %s1918
          %s1920 = sshll.u32 %s1895, 4
          %s1921 = int_to_ptr.vmem [resolvable:$true] %s1920
          %1926 = dma.vmem_to_hbm [thread:$0]  %s1921, 512, %s1919, %s1892, 128, 128, 8
        $region132: #{tpu_custom_call.1} parent=79 // pred_fallthru
          _
      $region80: #{tpu_custom_call.1} parent=5 // pred_fallthru
        _
      %p1927 = scmp.le.s32.totalorder 2, %s39
      // Predicated region
      $region133: #{tpu_custom_call.1} parent=5 // pred_check
        %p1928 = pneg %p1927
      $region134: #{tpu_custom_call.1} parent=5 // pred_check_branch
        %1930 = sbr.rel (%p1928) target = $region136
      $region135: #{tpu_custom_call.1} parent=5 // pred_region
        %s1931 = ssub.s32 %s39, 2
        // Predicated region
        $region137: #{tpu_custom_call.1} parent=135 // pred_check
          %p1932 = pneg %p424
        $region138: #{tpu_custom_call.1} parent=135 // pred_check_branch
          %1934 = sbr.rel (%p1932) target = $region140
        $region139: #{tpu_custom_call.1} parent=135 // pred_region
          %s1935 = sand.u32 %s409, 1
          %s1936 = scalar_lea.sflag [#allocation4], %s1935
          %s1937 = sand.u32 %s409, 1
          %s1938 = smul.addr %s1937, 8
          %s1939 = scalar_lea.vmem [#allocation20], %s1938
          %1940 = dma.done %s1936, 128
        $region140: #{tpu_custom_call.1} parent=135 // pred_fallthru
          _
        // Predicated region
        $region141: #{tpu_custom_call.1} parent=135 // pred_check
          %p1941 = pneg %p452
        $region142: #{tpu_custom_call.1} parent=135 // pred_check_branch
          %1943 = sbr.rel (%p1941) target = $region144
        $region143: #{tpu_custom_call.1} parent=135 // pred_region
          %s1944 = sand.u32 %s437, 1
          %s1945 = scalar_lea.sflag [#allocation22], %s1944
          %s1946 = sand.u32 %s437, 1
          %s1947 = smul.addr %s1946, 32
          %s1948 = scalar_lea.vmem [#allocation21], %s1947
          %1949 = dma.done %s1945, 512
        $region144: #{tpu_custom_call.1} parent=135 // pred_fallthru
          _
      $region136: #{tpu_custom_call.1} parent=5 // pred_fallthru
        _
    $region6: #{tpu_custom_call.1} parent=1 // loop_footer
      %s43 = sadd.s32 1, %s39
    $region7: #{tpu_custom_call.1} parent=1 // loop_footer_branch
      %38 = sbr.rel target = $region3
    $region8: #{tpu_custom_call.1} parent=1 // loop_exit
      _
    %1950 = vsyncpa [#allocation3], 1
    %s1951 = scalar_lea.sflag [#allocation3], 1
    %1952 = vsyncpa %s1951, 1
    %1953 = vsyncpa [#allocation6], 1
    %s1954 = scalar_lea.sflag [#allocation6], 1
    %1955 = vsyncpa %s1954, 1
    %1956 = vsyncpa [#allocation9], 1
    %1957 = vsyncpa [#allocation12], 1
    %1958 = vsyncpa [#allocation15], 1
    %1959 = vsyncpa [#allocation18], 1
    %1960 = vsyncpa [#allocation4], 1
    %s1961 = scalar_lea.sflag [#allocation4], 1
    %1962 = vsyncpa %s1961, 1
    %1963 = vsyncpa [#allocation22], 1
    %s1964 = scalar_lea.sflag [#allocation22], 1
    %1965 = vsyncpa %s1964, 1

</llo_original>
